<compile_context>
chip_gen: v7x
topology: tpu7x:2x2x1
jax: 0.10.0
libtpu: 0.0.40
codegen_flags: <defaults>
</compile_context>

<pallas_src>
import jax
import jax.numpy as jnp
from jax.experimental import pallas as pl
from jax.experimental.pallas import tpu as pltpu


def _feature_agg_kernel(nf_ref, nb_ref,
                        wfuse_ref, bfu_ref,
                        w1_ref, b1_ref, wt_ref,
                        w2_ref, b2_ref,
                        wnf_ref, wnaf_ref, b_ref,
                        out_ref, att_ref):
    nf = nf_ref[...]                                    # (Bt, E) f32
    Bt, E = nf.shape
    T, _, K, F = nb_ref.shape

    # ---- hoisted invariant weight / bias loads ------------------------------
    wfuse = wfuse_ref[...]                              # (F, E)  bf16
    bfu = bfu_ref[...]                                  # (1, E)  f32
    w1 = w1_ref[...]                                    # (E, E)
    b1 = b1_ref[...]                                    # (1, E)
    wt = wt_ref[...]                                    # (T, E, T)

    # ---- neighbor fusion: ONE MXU pass over all types ------------------------
    # external `fusion` = relu(Linear(concat([emb, prof]))).  emb/prof were
    # interleaved in the wrapper, so the concat is simply the contraction dim.
    slab = nb_ref[...].reshape(T * Bt * K, F)           # bf16
    fused = jnp.maximum(
        jnp.dot(slab, wfuse, preferred_element_type=jnp.float32) + bfu,
        0.0).reshape(T, Bt, K, E)                       # f32

    # ---- per-type neighbor attention over K (external `att`) -----------------
    feats = []
    for t in range(T):                                  # static, T is tiny
        neighs = fused[t]                               # (Bt, K, E)
        scores = jnp.sum(neighs * nf[:, None, :], axis=-1)           # (Bt, K)
        scores = scores - jnp.max(scores, axis=-1, keepdims=True)
        p = jnp.exp(scores)
        p = p * pl.reciprocal(jnp.sum(p, axis=-1, keepdims=True), approx=True)
        # neigh_feature_matrix = neighs_fusion.T @ att  (per node)
        feats.append(jnp.sum(neighs * p[:, :, None], axis=1))        # (Bt, E)

    # ---- relu(linear_1(.)) once, on the type-stacked (T*Bt, E) slab ----------
    feat_stack = jnp.concatenate(feats, axis=0)                      # (T*Bt, E)
    agg_stack = jnp.maximum(
        jnp.dot(feat_stack, w1, preferred_element_type=jnp.float32) + b1, 0.0)
    aggs = [agg_stack[t * Bt:(t + 1) * Bt] for t in range(T)]        # (Bt, E)

    # ---- type-level attention -------------------------------------------------
    # logits = concat(aggs) @ w_type_att.T — concat-free via per-type wt slices
    logits = jnp.zeros((Bt, T), jnp.float32)
    for t in range(T):
        logits = logits + jnp.dot(aggs[t], wt[t],
                                  preferred_element_type=jnp.float32)
    logits = logits - jnp.max(logits, axis=-1, keepdims=True)
    a = jnp.exp(logits)
    a = a * pl.reciprocal(jnp.sum(a, axis=-1, keepdims=True), approx=True)
    att_ref[...] = a

    # neigh_agg_final = (type_agg.view(B,T,E)^T @ att).squeeze()
    naf = jnp.zeros_like(nf)
    for t in range(T):
        naf = naf + a[:, t:t + 1] * aggs[t]

    # relu(linear_2(.))
    naf = jnp.maximum(
        jnp.dot(naf, w2_ref[...], preferred_element_type=jnp.float32)
        + b2_ref[...], 0.0)

    # relu(linear(concat([nodes_fusion, neigh_agg_final]))) — concat removed by
    # splitting `linear`'s weight into node / neighbor halves.
    out_ref[...] = jnp.maximum(
        jnp.dot(nf, wnf_ref[...], preferred_element_type=jnp.float32)
        + jnp.dot(naf, wnaf_ref[...], preferred_element_type=jnp.float32)
        + b_ref[...], 0.0)


def feature_agg_forward(nodes_fusion, neighs_emb, neighs_prof,
                        fusion_params, params, *, block_b=None):
    """FeatureAgg.forward.

    nodes_fusion : (B, E)        already-fused node features
    neighs_emb   : (T, B, K, E)  gathered neighbor embeddings
    neighs_prof  : (T, B, K, P)  gathered neighbor profiles
    fusion_params: (wf, bf)      external `fusion` Linear params (applied to the
                                 neighbors inside the kernel)
    params       : (w1, b1, wt, w2, b2, w, b)  in PyTorch nn.Linear layout
    """
    wf, bf = fusion_params
    w1, b1, wt, w2, b2, w, b = params
    B, E = nodes_fusion.shape
    T, _, K, _ = neighs_emb.shape
    P = neighs_prof.shape[-1]
    F = E + P
    f32, bf16 = jnp.float32, jnp.bfloat16

    # ---- batch tile selection (no divisibility requirement: we pad) ----------
    if block_b is None:
        block_b = 512            # ~85% of HBM roofline knee; VMEM-safe on v7x
        while block_b > 8 and block_b * 2 > B:
            block_b //= 2        # keep >= 2 grid steps when possible (megacore)
    block_b = max(8, int(block_b))
    grid_steps = -(-B // block_b)
    B_pad = grid_steps * block_b
    grid = (grid_steps,)

    # ---- one-time wrapper-side re-layout --------------------------------------
    # * neighbor emb/prof interleaved into one bf16 (T, B, K, E+P) stream
    #   (in production this folds directly into the gather glue).
    # * all weights transposed to (in, out); weights acting on concatenated
    #   features split per-half / per-type, so no in-kernel .T or concat remain.
    neighs_feat = jnp.concatenate([neighs_emb, neighs_prof], axis=-1).astype(bf16)
    nodes_f = nodes_fusion.astype(f32)   # small stream; keep f32 for score math
    if B_pad != B:
        nodes_f = jnp.pad(nodes_f, ((0, B_pad - B), (0, 0)))
        neighs_feat = jnp.pad(neighs_feat,
                              ((0, 0), (0, B_pad - B), (0, 0), (0, 0)))

    wfuse = jnp.asarray(wf.T, bf16)                    # (E+P, E) fusion Linear
    bfu = bf.reshape(1, E).astype(f32)
    w1t = jnp.asarray(w1.T, f32)                       # (E, E)
    b12 = b1.reshape(1, E).astype(f32)
    wtt = jnp.asarray(wt.T.reshape(T, E, T), f32)      # per-type (E, T) slices
    w2t = jnp.asarray(w2.T, f32)                       # (E, E)
    b22 = b2.reshape(1, E).astype(f32)
    wnf = jnp.asarray(w[:, :E].T, f32)                 # final linear, node half
    wnaf = jnp.asarray(w[:, E:].T, f32)                # final linear, neigh half
    b2d = b.reshape(1, E).astype(f32)

    def const(*shape):
        return pl.BlockSpec(shape, lambda i: (0,) * len(shape))

    in_specs = [
        pl.BlockSpec((block_b, E), lambda i: (i, 0)),              # nodes_fusion
        pl.BlockSpec((T, block_b, K, F), lambda i: (0, i, 0, 0)),  # neighbors bf16
        const(F, E), const(1, E),                                  # wfuse, bfu
        const(E, E), const(1, E),                                  # w1, b1
        const(T, E, T),                                            # wt slices
        const(E, E), const(1, E),                                  # w2, b2
        const(E, E), const(E, E), const(1, E),                     # w_nf, w_naf, b
    ]
    out_specs = (
        pl.BlockSpec((block_b, E), lambda i: (i, 0)),              # combined_feature
        pl.BlockSpec((block_b, T), lambda i: (i, 0)),              # type attention
    )
    # TODO(synk): out/att last dims (E=32, T=2) stay lane-sparse, and the two
    # neighbor types could be lane-packed to (B,K,T*(E+P)=128) for a fully
    # occupied VPU path on v7x; skipped here since output/elementwise bytes are
    # negligible vs the neighbor DMA.
    # TODO(synk): optional fp8 (v7x) / int8 (v6e) neighbor tables with the
    # dequant scale folded into wfuse — accuracy-gated, left out.

    flops = (2 * T * B_pad * K * F * E        # fused neighbor Linear
             + 4 * T * B_pad * K * E          # attention scores + weighted sum
             + 2 * T * B_pad * E * E          # linear_1
             + 2 * T * B_pad * E * T          # type-attention logits
             + 2 * B_pad * E * E              # linear_2
             + 4 * B_pad * E * E)             # final linear (2E -> E)
    bytes_accessed = (2 * T * B_pad * K * F          # bf16 neighbor stream
                      + 4 * B_pad * (2 * E + T)      # nodes_fusion + outputs
                      + 2 * F * E
                      + 4 * (4 * E * E + T * E * T + 5 * E))
    cost = pl.CostEstimate(flops=flops,
                           transcendentals=T * B_pad * K + B_pad * T,
                           bytes_accessed=bytes_accessed)

    out, att = pl.pallas_call(
        _feature_agg_kernel,
        out_shape=(jax.ShapeDtypeStruct((B_pad, E), f32),
                   jax.ShapeDtypeStruct((B_pad, T), f32)),
        grid=grid,
        in_specs=in_specs,
        out_specs=out_specs,
        compiler_params=pltpu.CompilerParams(
            dimension_semantics=("parallel",),
            vmem_limit_bytes=48 * 1024 * 1024),
        cost_estimate=cost,
    )(nodes_f, neighs_feat,
      wfuse, bfu, w1t, b12, wtt, w2t, b22, wnf, wnaf, b2d)
    return out[:B], att[:B].reshape(B, T, 1)


def _reference(nodes_fusion, neighs_emb, neighs_prof, fusion_params, params):
    """Pure-JAX f32 reference mirroring the PyTorch forward semantics."""
    wf, bf = fusion_params
    w1, b1, wt, w2, b2, w, b = params
    T = neighs_emb.shape[0]
    neighs_fusion = jax.nn.relu(
        jnp.concatenate([neighs_emb, neighs_prof], axis=-1) @ wf.T + bf)
    aggs = []
    for t in range(T):
        nb = neighs_fusion[t]
        s = jnp.sum(nb * nodes_fusion[:, None, :], axis=-1)
        p = jax.nn.softmax(s, axis=-1)
        feat = jnp.sum(nb * p[:, :, None], axis=1)
        aggs.append(jax.nn.relu(feat @ w1.T + b1))
    type_agg = jnp.concatenate(aggs, axis=-1)
    a = jax.nn.softmax(type_agg @ wt.T, axis=-1)
    naf = jnp.einsum('tbe,bt->be', jnp.stack(aggs, 0), a)
    naf = jax.nn.relu(naf @ w2.T + b2)
    out = jax.nn.relu(jnp.concatenate([nodes_fusion, naf], -1) @ w.T + b)
    return out, a[:, :, None]


if __name__ == "__main__":
    B, E, K, T = 16, 32, 8, 2          # batch, emb_size, neighbors/node, types
    P = E                              # profile feature dim
    N_NODES, N_NEIGH = 64, 64

    keys = jax.random.split(jax.random.PRNGKey(0), 16)

    # "nn.Embedding.weight" tables and profile tensors (deterministic init)
    node_emb_table = jax.random.normal(keys[0], (N_NODES, E), jnp.float32)
    node_prof_table = jax.random.normal(keys[1], (N_NODES, P), jnp.float32)
    neigh_emb_tables = jax.random.normal(keys[2], (T, N_NEIGH, E), jnp.float32)
    neigh_prof_tables = jax.random.normal(keys[3], (T, N_NEIGH, P), jnp.float32)

    # node indices and per-type neighbor indices (fixed K per node)
    nodes = jax.random.randint(keys[4], (B,), 0, N_NODES)
    neigh_idx = jax.random.randint(keys[5], (T, B, K), 0, N_NEIGH)

    # external `fusion` module: relu(Linear(concat([emb, profile])))
    wf = jax.random.normal(keys[6], (E, E + P), jnp.float32) * 0.1
    bf = jax.random.normal(keys[7], (E,), jnp.float32) * 0.1

    def fusion(emb, prof):
        return jax.nn.relu(jnp.concatenate([emb, prof], axis=-1) @ wf.T + bf)

    # FeatureAgg's own parameters (PyTorch nn.Linear layout: (out, in))
    w1 = jax.random.normal(keys[8], (E, E), jnp.float32) * 0.1       # linear_1
    b1 = jax.random.normal(keys[9], (E,), jnp.float32) * 0.1
    wt = jax.random.normal(keys[10], (T, T * E), jnp.float32) * 0.1  # w_type_att
    w2 = jax.random.normal(keys[11], (E, E), jnp.float32) * 0.1      # linear_2
    b2 = jax.random.normal(keys[12], (E,), jnp.float32) * 0.1
    w = jax.random.normal(keys[13], (E, 2 * E), jnp.float32) * 0.1   # linear
    b = jax.random.normal(keys[14], (E,), jnp.float32) * 0.1
    params = (w1, b1, wt, w2, b2, w, b)

    # glue: embedding-table / profile gathers + node-side fusion in plain JAX
    # (replaces the dict / list-of-lists lookups of the PyTorch code)
    nodes_fusion = fusion(node_emb_table[nodes], node_prof_table[nodes])            # (B, E)
    neighs_emb = jax.vmap(lambda tab, idx: tab[idx])(neigh_emb_tables, neigh_idx)   # (T,B,K,E)
    neighs_prof = jax.vmap(lambda tab, idx: tab[idx])(neigh_prof_tables, neigh_idx)  # (T,B,K,P)

    # block_b=8 -> grid=(2,) so the batch tiling / pipelining path is exercised
    out, att = feature_agg_forward(nodes_fusion, neighs_emb, neighs_prof,
                                   (wf, bf), params, block_b=8)
    jax.block_until_ready((out, att))

    ref_out, ref_att = _reference(nodes_fusion, neighs_emb, neighs_prof,
                                  (wf, bf), params)
    assert out.shape == (B, E) and att.shape == (B, T, 1)
    # bf16 neighbor stream + approx reciprocal -> ~1e-2 relative vs f32 reference
    assert jnp.allclose(out, ref_out, atol=5e-2, rtol=5e-2), \
        float(jnp.max(jnp.abs(out - ref_out)))
    assert jnp.allclose(att, ref_att, atol=5e-2, rtol=5e-2), \
        float(jnp.max(jnp.abs(att - ref_att)))

    print("KERNEL_OK")
</pallas_src>

<mosaic_0001>
module attributes {stable_mosaic.version = 11 : i64} {
  func.func @_feature_agg_kernel(%arg0: i32, %arg1: memref<8x32xf32, #tpu.memory_space<vmem>>, %arg2: memref<2x8x8x64xbf16, #tpu.memory_space<vmem>>, %arg3: memref<64x32xbf16, #tpu.memory_space<vmem>>, %arg4: memref<1x32xf32, #tpu.memory_space<vmem>>, %arg5: memref<32x32xf32, #tpu.memory_space<vmem>>, %arg6: memref<1x32xf32, #tpu.memory_space<vmem>>, %arg7: memref<2x32x2xf32, #tpu.memory_space<vmem>>, %arg8: memref<32x32xf32, #tpu.memory_space<vmem>>, %arg9: memref<1x32xf32, #tpu.memory_space<vmem>>, %arg10: memref<32x32xf32, #tpu.memory_space<vmem>>, %arg11: memref<32x32xf32, #tpu.memory_space<vmem>>, %arg12: memref<1x32xf32, #tpu.memory_space<vmem>>, %arg13: memref<8x32xf32, #tpu.memory_space<vmem>>, %arg14: memref<8x2xf32, #tpu.memory_space<vmem>>) attributes {dimension_semantics = [#tpu.dimension_semantics<parallel>], iteration_bounds = array<i64: 2>, scalar_prefetch = 0 : i64, scratch_operands = 0 : i64, tpu.core_type = #tpu.core_type<tc>, window_params = [{transform_indices = @transform_0, window_bounds = array<i64: 8, 32>}, {transform_indices = @transform_1, window_bounds = array<i64: 2, 8, 8, 64>}, {pipeline_mode = #tpu.pipeline_mode<synchronous>, transform_indices = @transform_2, window_bounds = array<i64: 64, 32>}, {pipeline_mode = #tpu.pipeline_mode<synchronous>, transform_indices = @transform_3, window_bounds = array<i64: 1, 32>}, {pipeline_mode = #tpu.pipeline_mode<synchronous>, transform_indices = @transform_4, window_bounds = array<i64: 32, 32>}, {pipeline_mode = #tpu.pipeline_mode<synchronous>, transform_indices = @transform_5, window_bounds = array<i64: 1, 32>}, {pipeline_mode = #tpu.pipeline_mode<synchronous>, transform_indices = @transform_6, window_bounds = array<i64: 2, 32, 2>}, {pipeline_mode = #tpu.pipeline_mode<synchronous>, transform_indices = @transform_7, window_bounds = array<i64: 32, 32>}, {pipeline_mode = #tpu.pipeline_mode<synchronous>, transform_indices = @transform_8, window_bounds = array<i64: 1, 32>}, {pipeline_mode = #tpu.pipeline_mode<synchronous>, transform_indices = @transform_9, window_bounds = array<i64: 32, 32>}, {pipeline_mode = #tpu.pipeline_mode<synchronous>, transform_indices = @transform_10, window_bounds = array<i64: 32, 32>}, {pipeline_mode = #tpu.pipeline_mode<synchronous>, transform_indices = @transform_11, window_bounds = array<i64: 1, 32>}, {transform_indices = @transform_12, window_bounds = array<i64: 8, 32>}, {transform_indices = @transform_13, window_bounds = array<i64: 8, 2>}]} {
    %c0 = arith.constant 0 : index
    %c0_0 = arith.constant 0 : index
    %0 = vector.load %arg1[%c0, %c0_0] : memref<8x32xf32, #tpu.memory_space<vmem>>, vector<8x32xf32>
    %c0_1 = arith.constant 0 : index
    %c0_2 = arith.constant 0 : index
    %1 = vector.load %arg3[%c0_1, %c0_2] : memref<64x32xbf16, #tpu.memory_space<vmem>>, vector<64x32xbf16>
    %c0_3 = arith.constant 0 : index
    %c0_4 = arith.constant 0 : index
    %2 = vector.load %arg4[%c0_3, %c0_4] : memref<1x32xf32, #tpu.memory_space<vmem>>, vector<1x32xf32>
    %c0_5 = arith.constant 0 : index
    %c0_6 = arith.constant 0 : index
    %3 = vector.load %arg5[%c0_5, %c0_6] : memref<32x32xf32, #tpu.memory_space<vmem>>, vector<32x32xf32>
    %c0_7 = arith.constant 0 : index
    %c0_8 = arith.constant 0 : index
    %4 = vector.load %arg6[%c0_7, %c0_8] : memref<1x32xf32, #tpu.memory_space<vmem>>, vector<1x32xf32>
    %c0_9 = arith.constant 0 : index
    %c0_10 = arith.constant 0 : index
    %c0_11 = arith.constant 0 : index
    %5 = vector.load %arg7[%c0_9, %c0_10, %c0_11] : memref<2x32x2xf32, #tpu.memory_space<vmem>>, vector<2x32x2xf32>
    %c0_12 = arith.constant 0 : index
    %c0_13 = arith.constant 0 : index
    %c0_14 = arith.constant 0 : index
    %c0_15 = arith.constant 0 : index
    %6 = vector.load %arg2[%c0_12, %c0_13, %c0_14, %c0_15] : memref<2x8x8x64xbf16, #tpu.memory_space<vmem>>, vector<2x8x8x64xbf16>
    %7 = vector.shape_cast %6 : vector<2x8x8x64xbf16> to vector<128x64xbf16>
    %cst = arith.constant dense<0.000000e+00> : vector<128x32xf32>
    %8 = tpu.matmul %7, %1, %cst {dimension_numbers = #tpu.dot_dimension_numbers<[1], [0], [0], [1], [0, 0, 1, 1], [], []>} : vector<128x64xbf16>, vector<64x32xbf16>, vector<128x32xf32> -> vector<128x32xf32>
    %9 = vector.broadcast %2 : vector<1x32xf32> to vector<128x32xf32>
    %10 = arith.addf %8, %9 : vector<128x32xf32>
    %cst_16 = arith.constant 0.000000e+00 : f32
    %11 = vector.broadcast %cst_16 : f32 to vector<128x32xf32>
    %12 = arith.maximumf %10, %11 : vector<128x32xf32>
    %13 = vector.shape_cast %12 : vector<128x32xf32> to vector<2x8x8x32xf32>
    %14 = vector.extract_strided_slice %13 {offsets = [0, 0, 0, 0], sizes = [1, 8, 8, 32], strides = [1, 1, 1, 1]} : vector<2x8x8x32xf32> to vector<1x8x8x32xf32>
    %15 = vector.shape_cast %14 : vector<1x8x8x32xf32> to vector<8x8x32xf32>
    %16 = vector.shape_cast %0 : vector<8x32xf32> to vector<8x1x32xf32>
    %17 = vector.broadcast %16 : vector<8x1x32xf32> to vector<8x8x32xf32>
    %18 = arith.mulf %15, %17 : vector<8x8x32xf32>
    %cst_17 = arith.constant dense<0.000000e+00> : vector<8x8xf32>
    %19 = vector.multi_reduction <add>, %18, %cst_17 [2] : vector<8x8x32xf32> to vector<8x8xf32>
    %cst_18 = arith.constant dense<0xFF800000> : vector<8xf32>
    %20 = vector.multi_reduction <maximumf>, %19, %cst_18 [1] : vector<8x8xf32> to vector<8xf32>
    %21 = vector.shape_cast %20 : vector<8xf32> to vector<8x1xf32>
    %22 = vector.broadcast %21 : vector<8x1xf32> to vector<8x8xf32>
    %23 = arith.subf %19, %22 : vector<8x8xf32>
    %24 = math.exp %23 : vector<8x8xf32>
    %cst_19 = arith.constant dense<0.000000e+00> : vector<8xf32>
    %25 = vector.multi_reduction <add>, %24, %cst_19 [1] : vector<8x8xf32> to vector<8xf32>
    %26 = vector.shape_cast %25 : vector<8xf32> to vector<8x1xf32>
    %27 = tpu.reciprocal %26 {approx = true} : vector<8x1xf32> -> vector<8x1xf32>
    %28 = vector.broadcast %27 : vector<8x1xf32> to vector<8x8xf32>
    %29 = arith.mulf %24, %28 : vector<8x8xf32>
    %30 = vector.shape_cast %29 : vector<8x8xf32> to vector<8x8x1xf32>
    %31 = vector.broadcast %30 : vector<8x8x1xf32> to vector<8x8x32xf32>
    %32 = arith.mulf %15, %31 : vector<8x8x32xf32>
    %cst_20 = arith.constant dense<0.000000e+00> : vector<8x32xf32>
    %33 = vector.multi_reduction <add>, %32, %cst_20 [1] : vector<8x8x32xf32> to vector<8x32xf32>
    %34 = vector.extract_strided_slice %13 {offsets = [1, 0, 0, 0], sizes = [1, 8, 8, 32], strides = [1, 1, 1, 1]} : vector<2x8x8x32xf32> to vector<1x8x8x32xf32>
    %35 = vector.shape_cast %34 : vector<1x8x8x32xf32> to vector<8x8x32xf32>
    %36 = vector.shape_cast %0 : vector<8x32xf32> to vector<8x1x32xf32>
    %37 = vector.broadcast %36 : vector<8x1x32xf32> to vector<8x8x32xf32>
    %38 = arith.mulf %35, %37 : vector<8x8x32xf32>
    %cst_21 = arith.constant dense<0.000000e+00> : vector<8x8xf32>
    %39 = vector.multi_reduction <add>, %38, %cst_21 [2] : vector<8x8x32xf32> to vector<8x8xf32>
    %cst_22 = arith.constant dense<0xFF800000> : vector<8xf32>
    %40 = vector.multi_reduction <maximumf>, %39, %cst_22 [1] : vector<8x8xf32> to vector<8xf32>
    %41 = vector.shape_cast %40 : vector<8xf32> to vector<8x1xf32>
    %42 = vector.broadcast %41 : vector<8x1xf32> to vector<8x8xf32>
    %43 = arith.subf %39, %42 : vector<8x8xf32>
    %44 = math.exp %43 : vector<8x8xf32>
    %cst_23 = arith.constant dense<0.000000e+00> : vector<8xf32>
    %45 = vector.multi_reduction <add>, %44, %cst_23 [1] : vector<8x8xf32> to vector<8xf32>
    %46 = vector.shape_cast %45 : vector<8xf32> to vector<8x1xf32>
    %47 = tpu.reciprocal %46 {approx = true} : vector<8x1xf32> -> vector<8x1xf32>
    %48 = vector.broadcast %47 : vector<8x1xf32> to vector<8x8xf32>
    %49 = arith.mulf %44, %48 : vector<8x8xf32>
    %50 = vector.shape_cast %49 : vector<8x8xf32> to vector<8x8x1xf32>
    %51 = vector.broadcast %50 : vector<8x8x1xf32> to vector<8x8x32xf32>
    %52 = arith.mulf %35, %51 : vector<8x8x32xf32>
    %cst_24 = arith.constant dense<0.000000e+00> : vector<8x32xf32>
    %53 = vector.multi_reduction <add>, %52, %cst_24 [1] : vector<8x8x32xf32> to vector<8x32xf32>
    %54 = tpu.concatenate %33, %53 in 0 : vector<8x32xf32>, vector<8x32xf32> -> vector<16x32xf32>
    %cst_25 = arith.constant dense<0.000000e+00> : vector<16x32xf32>
    %55 = tpu.matmul %54, %3, %cst_25 {dimension_numbers = #tpu.dot_dimension_numbers<[1], [0], [0], [1], [0, 0, 1, 1], [], []>} : vector<16x32xf32>, vector<32x32xf32>, vector<16x32xf32> -> vector<16x32xf32>
    %56 = vector.broadcast %4 : vector<1x32xf32> to vector<16x32xf32>
    %57 = arith.addf %55, %56 : vector<16x32xf32>
    %cst_26 = arith.constant 0.000000e+00 : f32
    %58 = vector.broadcast %cst_26 : f32 to vector<16x32xf32>
    %59 = arith.maximumf %57, %58 : vector<16x32xf32>
    %60 = vector.extract_strided_slice %59 {offsets = [0, 0], sizes = [8, 32], strides = [1, 1]} : vector<16x32xf32> to vector<8x32xf32>
    %61 = vector.extract_strided_slice %59 {offsets = [8, 0], sizes = [8, 32], strides = [1, 1]} : vector<16x32xf32> to vector<8x32xf32>
    %cst_27 = arith.constant 0.000000e+00 : f32
    %62 = vector.broadcast %cst_27 : f32 to vector<8x2xf32>
    %63 = vector.extract_strided_slice %5 {offsets = [0, 0, 0], sizes = [1, 32, 2], strides = [1, 1, 1]} : vector<2x32x2xf32> to vector<1x32x2xf32>
    %64 = vector.shape_cast %63 : vector<1x32x2xf32> to vector<32x2xf32>
    %cst_28 = arith.constant dense<0.000000e+00> : vector<8x2xf32>
    %65 = tpu.matmul %60, %64, %cst_28 {dimension_numbers = #tpu.dot_dimension_numbers<[1], [0], [0], [1], [0, 0, 1, 1], [], []>} : vector<8x32xf32>, vector<32x2xf32>, vector<8x2xf32> -> vector<8x2xf32>
    %66 = arith.addf %62, %65 : vector<8x2xf32>
    %67 = vector.extract_strided_slice %5 {offsets = [1, 0, 0], sizes = [1, 32, 2], strides = [1, 1, 1]} : vector<2x32x2xf32> to vector<1x32x2xf32>
    %68 = vector.shape_cast %67 : vector<1x32x2xf32> to vector<32x2xf32>
    %cst_29 = arith.constant dense<0.000000e+00> : vector<8x2xf32>
    %69 = tpu.matmul %61, %68, %cst_29 {dimension_numbers = #tpu.dot_dimension_numbers<[1], [0], [0], [1], [0, 0, 1, 1], [], []>} : vector<8x32xf32>, vector<32x2xf32>, vector<8x2xf32> -> vector<8x2xf32>
    %70 = arith.addf %66, %69 : vector<8x2xf32>
    %cst_30 = arith.constant dense<0xFF800000> : vector<8xf32>
    %71 = vector.multi_reduction <maximumf>, %70, %cst_30 [1] : vector<8x2xf32> to vector<8xf32>
    %72 = vector.shape_cast %71 : vector<8xf32> to vector<8x1xf32>
    %73 = vector.broadcast %72 : vector<8x1xf32> to vector<8x2xf32>
    %74 = arith.subf %70, %73 : vector<8x2xf32>
    %75 = math.exp %74 : vector<8x2xf32>
    %cst_31 = arith.constant dense<0.000000e+00> : vector<8xf32>
    %76 = vector.multi_reduction <add>, %75, %cst_31 [1] : vector<8x2xf32> to vector<8xf32>
    %77 = vector.shape_cast %76 : vector<8xf32> to vector<8x1xf32>
    %78 = tpu.reciprocal %77 {approx = true} : vector<8x1xf32> -> vector<8x1xf32>
    %79 = vector.broadcast %78 : vector<8x1xf32> to vector<8x2xf32>
    %80 = arith.mulf %75, %79 : vector<8x2xf32>
    %c0_32 = arith.constant 0 : index
    %c0_33 = arith.constant 0 : index
    %81 = vector.load %arg14[%c0_32, %c0_33] : memref<8x2xf32, #tpu.memory_space<vmem>>, vector<8x2xf32>
    tpu.vector_store %arg14[%c0_32, %c0_33], %80 {strides = array<i32>} : memref<8x2xf32, #tpu.memory_space<vmem>>, vector<8x2xf32>,
    %cst_34 = arith.constant 0.000000e+00 : f32
    %82 = vector.broadcast %cst_34 : f32 to vector<8x32xf32>
    %83 = vector.extract_strided_slice %80 {offsets = [0, 0], sizes = [8, 1], strides = [1, 1]} : vector<8x2xf32> to vector<8x1xf32>
    %84 = vector.broadcast %83 : vector<8x1xf32> to vector<8x32xf32>
    %85 = arith.mulf %84, %60 : vector<8x32xf32>
    %86 = arith.addf %82, %85 : vector<8x32xf32>
    %87 = vector.extract_strided_slice %80 {offsets = [0, 1], sizes = [8, 1], strides = [1, 1]} : vector<8x2xf32> to vector<8x1xf32>
    %88 = vector.broadcast %87 : vector<8x1xf32> to vector<8x32xf32>
    %89 = arith.mulf %88, %61 : vector<8x32xf32>
    %90 = arith.addf %86, %89 : vector<8x32xf32>
    %c0_35 = arith.constant 0 : index
    %c0_36 = arith.constant 0 : index
    %91 = vector.load %arg8[%c0_35, %c0_36] : memref<32x32xf32, #tpu.memory_space<vmem>>, vector<32x32xf32>
    %cst_37 = arith.constant dense<0.000000e+00> : vector<8x32xf32>
    %92 = tpu.matmul %90, %91, %cst_37 {dimension_numbers = #tpu.dot_dimension_numbers<[1], [0], [0], [1], [0, 0, 1, 1], [], []>} : vector<8x32xf32>, vector<32x32xf32>, vector<8x32xf32> -> vector<8x32xf32>
    %c0_38 = arith.constant 0 : index
    %c0_39 = arith.constant 0 : index
    %93 = vector.load %arg9[%c0_38, %c0_39] : memref<1x32xf32, #tpu.memory_space<vmem>>, vector<1x32xf32>
    %94 = vector.broadcast %93 : vector<1x32xf32> to vector<8x32xf32>
    %95 = arith.addf %92, %94 : vector<8x32xf32>
    %cst_40 = arith.constant 0.000000e+00 : f32
    %96 = vector.broadcast %cst_40 : f32 to vector<8x32xf32>
    %97 = arith.maximumf %95, %96 : vector<8x32xf32>
    %c0_41 = arith.constant 0 : index
    %c0_42 = arith.constant 0 : index
    %98 = vector.load %arg10[%c0_41, %c0_42] : memref<32x32xf32, #tpu.memory_space<vmem>>, vector<32x32xf32>
    %cst_43 = arith.constant dense<0.000000e+00> : vector<8x32xf32>
    %99 = tpu.matmul %0, %98, %cst_43 {dimension_numbers = #tpu.dot_dimension_numbers<[1], [0], [0], [1], [0, 0, 1, 1], [], []>} : vector<8x32xf32>, vector<32x32xf32>, vector<8x32xf32> -> vector<8x32xf32>
    %c0_44 = arith.constant 0 : index
    %c0_45 = arith.constant 0 : index
    %100 = vector.load %arg11[%c0_44, %c0_45] : memref<32x32xf32, #tpu.memory_space<vmem>>, vector<32x32xf32>
    %cst_46 = arith.constant dense<0.000000e+00> : vector<8x32xf32>
    %101 = tpu.matmul %97, %100, %cst_46 {dimension_numbers = #tpu.dot_dimension_numbers<[1], [0], [0], [1], [0, 0, 1, 1], [], []>} : vector<8x32xf32>, vector<32x32xf32>, vector<8x32xf32> -> vector<8x32xf32>
    %102 = arith.addf %99, %101 : vector<8x32xf32>
    %c0_47 = arith.constant 0 : index
    %c0_48 = arith.constant 0 : index
    %103 = vector.load %arg12[%c0_47, %c0_48] : memref<1x32xf32, #tpu.memory_space<vmem>>, vector<1x32xf32>
    %104 = vector.broadcast %103 : vector<1x32xf32> to vector<8x32xf32>
    %105 = arith.addf %102, %104 : vector<8x32xf32>
    %cst_49 = arith.constant 0.000000e+00 : f32
    %106 = vector.broadcast %cst_49 : f32 to vector<8x32xf32>
    %107 = arith.maximumf %105, %106 : vector<8x32xf32>
    %c0_50 = arith.constant 0 : index
    %c0_51 = arith.constant 0 : index
    %108 = vector.load %arg13[%c0_50, %c0_51] : memref<8x32xf32, #tpu.memory_space<vmem>>, vector<8x32xf32>
    tpu.vector_store %arg13[%c0_50, %c0_51], %107 {strides = array<i32>} : memref<8x32xf32, #tpu.memory_space<vmem>>, vector<8x32xf32>,
    return
  }
  func.func @transform_0(%arg0: i32) -> (i32, i32) {
    %c0_i32 = arith.constant 0 : i32
    %c0_i32_0 = arith.constant 0 : i32
    return %arg0, %c0_i32 : i32, i32
  }
  func.func @transform_1(%arg0: i32) -> (i32, i32, i32, i32) {
    %c0_i32 = arith.constant 0 : i32
    %c0_i32_0 = arith.constant 0 : i32
    %c0_i32_1 = arith.constant 0 : i32
    %c0_i32_2 = arith.constant 0 : i32
    return %c0_i32, %arg0, %c0_i32_0, %c0_i32_1 : i32, i32, i32, i32
  }
  func.func @transform_2(%arg0: i32) -> (i32, i32) {
    %c0_i32 = arith.constant 0 : i32
    %c0_i32_0 = arith.constant 0 : i32
    %c0_i32_1 = arith.constant 0 : i32
    return %c0_i32, %c0_i32_0 : i32, i32
  }
  func.func @transform_3(%arg0: i32) -> (i32, i32) {
    %c0_i32 = arith.constant 0 : i32
    %c0_i32_0 = arith.constant 0 : i32
    %c0_i32_1 = arith.constant 0 : i32
    return %c0_i32, %c0_i32_0 : i32, i32
  }
  func.func @transform_4(%arg0: i32) -> (i32, i32) {
    %c0_i32 = arith.constant 0 : i32
    %c0_i32_0 = arith.constant 0 : i32
    %c0_i32_1 = arith.constant 0 : i32
    return %c0_i32, %c0_i32_0 : i32, i32
  }
  func.func @transform_5(%arg0: i32) -> (i32, i32) {
    %c0_i32 = arith.constant 0 : i32
    %c0_i32_0 = arith.constant 0 : i32
    %c0_i32_1 = arith.constant 0 : i32
    return %c0_i32, %c0_i32_0 : i32, i32
  }
  func.func @transform_6(%arg0: i32) -> (i32, i32, i32) {
    %c0_i32 = arith.constant 0 : i32
    %c0_i32_0 = arith.constant 0 : i32
    %c0_i32_1 = arith.constant 0 : i32
    %c0_i32_2 = arith.constant 0 : i32
    return %c0_i32, %c0_i32_0, %c0_i32_1 : i32, i32, i32
  }
  func.func @transform_7(%arg0: i32) -> (i32, i32) {
    %c0_i32 = arith.constant 0 : i32
    %c0_i32_0 = arith.constant 0 : i32
    %c0_i32_1 = arith.constant 0 : i32
    return %c0_i32, %c0_i32_0 : i32, i32
  }
  func.func @transform_8(%arg0: i32) -> (i32, i32) {
    %c0_i32 = arith.constant 0 : i32
    %c0_i32_0 = arith.constant 0 : i32
    %c0_i32_1 = arith.constant 0 : i32
    return %c0_i32, %c0_i32_0 : i32, i32
  }
  func.func @transform_9(%arg0: i32) -> (i32, i32) {
    %c0_i32 = arith.constant 0 : i32
    %c0_i32_0 = arith.constant 0 : i32
    %c0_i32_1 = arith.constant 0 : i32
    return %c0_i32, %c0_i32_0 : i32, i32
  }
  func.func @transform_10(%arg0: i32) -> (i32, i32) {
    %c0_i32 = arith.constant 0 : i32
    %c0_i32_0 = arith.constant 0 : i32
    %c0_i32_1 = arith.constant 0 : i32
    return %c0_i32, %c0_i32_0 : i32, i32
  }
  func.func @transform_11(%arg0: i32) -> (i32, i32) {
    %c0_i32 = arith.constant 0 : i32
    %c0_i32_0 = arith.constant 0 : i32
    %c0_i32_1 = arith.constant 0 : i32
    return %c0_i32, %c0_i32_0 : i32, i32
  }
  func.func @transform_12(%arg0: i32) -> (i32, i32) {
    %c0_i32 = arith.constant 0 : i32
    %c0_i32_0 = arith.constant 0 : i32
    return %arg0, %c0_i32 : i32, i32
  }
  func.func @transform_13(%arg0: i32) -> (i32, i32) {
    %c0_i32 = arith.constant 0 : i32
    %c0_i32_0 = arith.constant 0 : i32
    return %arg0, %c0_i32 : i32, i32
  }
}

</mosaic_0001>

<llo_original>
// kernel: tpu_custom_call.1
$region0: #{tpu_custom_call.1}
  #allocation0 [shape = 'u32[]', space=smem, size = 0x4, offset = 0x4, fixed_abs, tag = 'smem constant byte address 0x4 - core index']
  #allocation1 [shape = 'u32[144,128]{1,0:T(1,128)}', space=vmem, size = 0x12000, scoped, tag = 'internal scratch']
  #allocation8 [shape = 's32[]', space=sflag, size = 0x4, offset = 0, fixed_abs, tag = 'sflag constant byte address 0x0 - dummy sync flag']
  %s0 = inlined_call_operand.hbm [shape: f32[16,32], index: 0, kind: input, shape index: {}]
  %s1 = inlined_call_operand.hbm [shape: bf16[2,16,8,64], index: 1, kind: input, shape index: {}]
  %s2 = inlined_call_operand.vmem [shape: bf16[64,32], index: 2, kind: input, shape index: {}]
  %s3 = inlined_call_operand.vmem [shape: f32[1,32], index: 3, kind: input, shape index: {}]
  %s4 = inlined_call_operand.vmem [shape: f32[32,32], index: 4, kind: input, shape index: {}]
  %s5 = inlined_call_operand.vmem [shape: f32[1,32], index: 5, kind: input, shape index: {}]
  %s6 = inlined_call_operand.vmem [shape: f32[2,32,2], index: 6, kind: input, shape index: {}]
  %s7 = inlined_call_operand.vmem [shape: f32[32,32], index: 7, kind: input, shape index: {}]
  %s8 = inlined_call_operand.vmem [shape: f32[1,32], index: 8, kind: input, shape index: {}]
  %s9 = inlined_call_operand.vmem [shape: f32[32,32], index: 9, kind: input, shape index: {}]
  %s10 = inlined_call_operand.vmem [shape: f32[32,32], index: 10, kind: input, shape index: {}]
  %s11 = inlined_call_operand.vmem [shape: f32[1,32], index: 11, kind: input, shape index: {}]
  %s12 = inlined_call_operand.hbm [shape: f32[16,32], index: 12, kind: output, shape index: {0}]
  %s13 = inlined_call_operand.vmem [shape: f32[16,2], index: 13, kind: output, shape index: {1}]
  %14 = xla_tuple %s12, %s13
  %s15 = sld [smem:[#allocation0]]
  $region97: #{tpu_custom_call.1} parent=0
    _
  %s17 = ssub.s32 1, %s15
  %s18 = scalar_select 0, %s17, %s15
  $region1: #{tpu_custom_call.1} parent=0
    #allocation2 [shape = 'u8[8192]{0}', space=vmem, size = 0x2000, scoped, tag = 'input window, operand 0']
    #allocation3 [shape = 's32[2]{0}', space=sflag, size = 0x8, scoped, tag = 'scoped memory for tpu_custom_call.1']
    #allocation4 [shape = 's32[2]{0}', space=sflag, size = 0x8, scoped, tag = 'scoped memory for tpu_custom_call.1']
    #allocation5 [shape = 'u8[65536]{0}', space=vmem, size = 0x10000, scoped, tag = 'input window, operand 1']
    #allocation6 [shape = 's32[2]{0}', space=sflag, size = 0x8, scoped, tag = 'scoped memory for tpu_custom_call.1']
    #allocation7 [shape = 'u8[8192]{0}', space=vmem, size = 0x2000, scoped, tag = 'output window, operand 0']
    %19 = vsyncpa [#allocation3], 0
    %s20 = scalar_lea.sflag [#allocation3], 1
    %21 = vsyncpa %s20, 0
    %22 = vsyncpa [#allocation6], 0
    %s23 = scalar_lea.sflag [#allocation6], 1
    %24 = vsyncpa %s23, 0
    %25 = vsyncpa [#allocation4], 0
    %s26 = scalar_lea.sflag [#allocation4], 1
    %27 = vsyncpa %s26, 0
    loop: start=0, step=1, limit=4
    $region2: #{tpu_custom_call.1} parent=1 // loop_pre_header
      _
    $region3: #{tpu_custom_call.1} parent=1 // loop_header
      %s29 = sphi 0, %s33
      %p30 = scmp.ge.s32.totalorder %s29, 4
      %s39 = sphi 0, %s41
      %s42 = sphi 0, %s39
      %s43 = sphi 0, %s42
      %s59 = sphi 0, %s43
      %s65 = sphi 0, %s67
      %s68 = sphi 0, %s65
      %s69 = sphi 0, %s68
      %s85 = sphi 0, %s69
      %s89 = sphi 0, %s89
      %s91 = sphi 0, %s89
      %s92 = sphi 0, %s91
      %s106 = sphi 0, %s92
      %s110 = sphi 0, %s110
      %s112 = sphi 0, %s110
      %s113 = sphi 0, %s112
      %s127 = sphi 0, %s113
      %s131 = sphi 0, %s131
      %s133 = sphi 0, %s131
      %s134 = sphi 0, %s133
      %s148 = sphi 0, %s134
      %s152 = sphi 0, %s152
      %s154 = sphi 0, %s152
      %s155 = sphi 0, %s154
      %s169 = sphi 0, %s155
      %s173 = sphi 0, %s173
      %s175 = sphi 0, %s173
      %s176 = sphi 0, %s175
      %s190 = sphi 0, %s176
      %s194 = sphi 0, %s194
      %s196 = sphi 0, %s194
      %s197 = sphi 0, %s196
      %s211 = sphi 0, %s197
      %s215 = sphi 0, %s215
      %s217 = sphi 0, %s215
      %s218 = sphi 0, %s217
      %s232 = sphi 0, %s218
      %s236 = sphi 0, %s236
      %s238 = sphi 0, %s236
      %s239 = sphi 0, %s238
      %s253 = sphi 0, %s239
      %s257 = sphi 0, %s257
      %s259 = sphi 0, %s257
      %s260 = sphi 0, %s259
      %s274 = sphi 0, %s260
      %s278 = sphi 0, %s278
      %s280 = sphi 0, %s278
      %s281 = sphi 0, %s280
      %s295 = sphi 0, %s281
      %s301 = sphi 0, %s303
      %s304 = sphi 0, %s301
      %s305 = sphi 0, %s304
      %s321 = sphi 0, %s305
      %s327 = sphi 0, %s329
      %s330 = sphi 0, %s327
      %s331 = sphi 0, %s330
      %s347 = sphi 0, %s331
    $region4: #{tpu_custom_call.1} parent=1 // loop_header_branch
      %32 = sbr.rel (%p30) target = $region8
    $region5: #{tpu_custom_call.1} parent=1 // loop_body
      %s34 = ssub.s32 %s29, 1
      %s35 = ssub.s32 %s29, 2
      %s36 = sadd.s32 %s29, 1
      %s37 = ssub.s32 %s29, %s36
      %p38 = scmp.eq.s32.totalorder %s37, 0
      %s40 = sadd.s32 %s39, 1
      %s41 = scalar_select %p38, %s39, %s40
      %p44 = pneg %p38
      %p45 = scmp.eq.s32.totalorder %s29, 1
      %p46 = por %p44, %p45
      %p47 = scmp.ne.s32.totalorder %s39, %s42
      %p48 = scmp.eq.s32.totalorder %s29, 0
      %p49 = por %p47, %p48
      %p50 = scmp.ne.s32.totalorder %s39, %s42
      %p51 = scmp.eq.s32.totalorder %s34, 1
      %p52 = por %p50, %p51
      %p53 = scmp.ne.s32.totalorder %s42, %s43
      %p54 = scmp.eq.s32.totalorder %s34, 0
      %p55 = por %p53, %p54
      %p56 = scmp.ne.s32.totalorder %s42, %s43
      %p57 = scmp.eq.s32.totalorder %s35, 1
      %p58 = por %p56, %p57
      %p60 = scmp.ne.s32.totalorder %s43, %s59
      %p61 = scmp.eq.s32.totalorder %s35, 0
      %p62 = por %p60, %p61
      %s63 = ssub.s32 %s29, %s36
      %p64 = scmp.eq.s32.totalorder %s63, 0
      %s66 = sadd.s32 %s65, 1
      %s67 = scalar_select %p64, %s65, %s66
      %p70 = pneg %p64
      %p71 = scmp.eq.s32.totalorder %s29, 1
      %p72 = por %p70, %p71
      %p73 = scmp.ne.s32.totalorder %s65, %s68
      %p74 = scmp.eq.s32.totalorder %s29, 0
      %p75 = por %p73, %p74
      %p76 = scmp.ne.s32.totalorder %s65, %s68
      %p77 = scmp.eq.s32.totalorder %s34, 1
      %p78 = por %p76, %p77
      %p79 = scmp.ne.s32.totalorder %s68, %s69
      %p80 = scmp.eq.s32.totalorder %s34, 0
      %p81 = por %p79, %p80
      %p82 = scmp.ne.s32.totalorder %s68, %s69
      %p83 = scmp.eq.s32.totalorder %s35, 1
      %p84 = por %p82, %p83
      %p86 = scmp.ne.s32.totalorder %s69, %s85
      %p87 = scmp.eq.s32.totalorder %s35, 0
      %p88 = por %p86, %p87
      %s90 = sadd.s32 %s89, 1
      %p93 = scmp.eq.s32.totalorder %s29, 1
      %p94 = scmp.ne.s32.totalorder %s89, %s91
      %p95 = scmp.eq.s32.totalorder %s29, 0
      %p96 = por %p94, %p95
      %p97 = scmp.ne.s32.totalorder %s89, %s91
      %p98 = scmp.eq.s32.totalorder %s34, 1
      %p99 = por %p97, %p98
      %p100 = scmp.ne.s32.totalorder %s91, %s92
      %p101 = scmp.eq.s32.totalorder %s34, 0
      %p102 = por %p100, %p101
      %p103 = scmp.ne.s32.totalorder %s91, %s92
      %p104 = scmp.eq.s32.totalorder %s35, 1
      %p105 = por %p103, %p104
      %p107 = scmp.ne.s32.totalorder %s92, %s106
      %p108 = scmp.eq.s32.totalorder %s35, 0
      %p109 = por %p107, %p108
      %s111 = sadd.s32 %s110, 1
      %p114 = scmp.eq.s32.totalorder %s29, 1
      %p115 = scmp.ne.s32.totalorder %s110, %s112
      %p116 = scmp.eq.s32.totalorder %s29, 0
      %p117 = por %p115, %p116
      %p118 = scmp.ne.s32.totalorder %s110, %s112
      %p119 = scmp.eq.s32.totalorder %s34, 1
      %p120 = por %p118, %p119
      %p121 = scmp.ne.s32.totalorder %s112, %s113
      %p122 = scmp.eq.s32.totalorder %s34, 0
      %p123 = por %p121, %p122
      %p124 = scmp.ne.s32.totalorder %s112, %s113
      %p125 = scmp.eq.s32.totalorder %s35, 1
      %p126 = por %p124, %p125
      %p128 = scmp.ne.s32.totalorder %s113, %s127
      %p129 = scmp.eq.s32.totalorder %s35, 0
      %p130 = por %p128, %p129
      %s132 = sadd.s32 %s131, 1
      %p135 = scmp.eq.s32.totalorder %s29, 1
      %p136 = scmp.ne.s32.totalorder %s131, %s133
      %p137 = scmp.eq.s32.totalorder %s29, 0
      %p138 = por %p136, %p137
      %p139 = scmp.ne.s32.totalorder %s131, %s133
      %p140 = scmp.eq.s32.totalorder %s34, 1
      %p141 = por %p139, %p140
      %p142 = scmp.ne.s32.totalorder %s133, %s134
      %p143 = scmp.eq.s32.totalorder %s34, 0
      %p144 = por %p142, %p143
      %p145 = scmp.ne.s32.totalorder %s133, %s134
      %p146 = scmp.eq.s32.totalorder %s35, 1
      %p147 = por %p145, %p146
      %p149 = scmp.ne.s32.totalorder %s134, %s148
      %p150 = scmp.eq.s32.totalorder %s35, 0
      %p151 = por %p149, %p150
      %s153 = sadd.s32 %s152, 1
      %p156 = scmp.eq.s32.totalorder %s29, 1
      %p157 = scmp.ne.s32.totalorder %s152, %s154
      %p158 = scmp.eq.s32.totalorder %s29, 0
      %p159 = por %p157, %p158
      %p160 = scmp.ne.s32.totalorder %s152, %s154
      %p161 = scmp.eq.s32.totalorder %s34, 1
      %p162 = por %p160, %p161
      %p163 = scmp.ne.s32.totalorder %s154, %s155
      %p164 = scmp.eq.s32.totalorder %s34, 0
      %p165 = por %p163, %p164
      %p166 = scmp.ne.s32.totalorder %s154, %s155
      %p167 = scmp.eq.s32.totalorder %s35, 1
      %p168 = por %p166, %p167
      %p170 = scmp.ne.s32.totalorder %s155, %s169
      %p171 = scmp.eq.s32.totalorder %s35, 0
      %p172 = por %p170, %p171
      %s174 = sadd.s32 %s173, 1
      %p177 = scmp.eq.s32.totalorder %s29, 1
      %p178 = scmp.ne.s32.totalorder %s173, %s175
      %p179 = scmp.eq.s32.totalorder %s29, 0
      %p180 = por %p178, %p179
      %p181 = scmp.ne.s32.totalorder %s173, %s175
      %p182 = scmp.eq.s32.totalorder %s34, 1
      %p183 = por %p181, %p182
      %p184 = scmp.ne.s32.totalorder %s175, %s176
      %p185 = scmp.eq.s32.totalorder %s34, 0
      %p186 = por %p184, %p185
      %p187 = scmp.ne.s32.totalorder %s175, %s176
      %p188 = scmp.eq.s32.totalorder %s35, 1
      %p189 = por %p187, %p188
      %p191 = scmp.ne.s32.totalorder %s176, %s190
      %p192 = scmp.eq.s32.totalorder %s35, 0
      %p193 = por %p191, %p192
      %s195 = sadd.s32 %s194, 1
      %p198 = scmp.eq.s32.totalorder %s29, 1
      %p199 = scmp.ne.s32.totalorder %s194, %s196
      %p200 = scmp.eq.s32.totalorder %s29, 0
      %p201 = por %p199, %p200
      %p202 = scmp.ne.s32.totalorder %s194, %s196
      %p203 = scmp.eq.s32.totalorder %s34, 1
      %p204 = por %p202, %p203
      %p205 = scmp.ne.s32.totalorder %s196, %s197
      %p206 = scmp.eq.s32.totalorder %s34, 0
      %p207 = por %p205, %p206
      %p208 = scmp.ne.s32.totalorder %s196, %s197
      %p209 = scmp.eq.s32.totalorder %s35, 1
      %p210 = por %p208, %p209
      %p212 = scmp.ne.s32.totalorder %s197, %s211
      %p213 = scmp.eq.s32.totalorder %s35, 0
      %p214 = por %p212, %p213
      %s216 = sadd.s32 %s215, 1
      %p219 = scmp.eq.s32.totalorder %s29, 1
      %p220 = scmp.ne.s32.totalorder %s215, %s217
      %p221 = scmp.eq.s32.totalorder %s29, 0
      %p222 = por %p220, %p221
      %p223 = scmp.ne.s32.totalorder %s215, %s217
      %p224 = scmp.eq.s32.totalorder %s34, 1
      %p225 = por %p223, %p224
      %p226 = scmp.ne.s32.totalorder %s217, %s218
      %p227 = scmp.eq.s32.totalorder %s34, 0
      %p228 = por %p226, %p227
      %p229 = scmp.ne.s32.totalorder %s217, %s218
      %p230 = scmp.eq.s32.totalorder %s35, 1
      %p231 = por %p229, %p230
      %p233 = scmp.ne.s32.totalorder %s218, %s232
      %p234 = scmp.eq.s32.totalorder %s35, 0
      %p235 = por %p233, %p234
      %s237 = sadd.s32 %s236, 1
      %p240 = scmp.eq.s32.totalorder %s29, 1
      %p241 = scmp.ne.s32.totalorder %s236, %s238
      %p242 = scmp.eq.s32.totalorder %s29, 0
      %p243 = por %p241, %p242
      %p244 = scmp.ne.s32.totalorder %s236, %s238
      %p245 = scmp.eq.s32.totalorder %s34, 1
      %p246 = por %p244, %p245
      %p247 = scmp.ne.s32.totalorder %s238, %s239
      %p248 = scmp.eq.s32.totalorder %s34, 0
      %p249 = por %p247, %p248
      %p250 = scmp.ne.s32.totalorder %s238, %s239
      %p251 = scmp.eq.s32.totalorder %s35, 1
      %p252 = por %p250, %p251
      %p254 = scmp.ne.s32.totalorder %s239, %s253
      %p255 = scmp.eq.s32.totalorder %s35, 0
      %p256 = por %p254, %p255
      %s258 = sadd.s32 %s257, 1
      %p261 = scmp.eq.s32.totalorder %s29, 1
      %p262 = scmp.ne.s32.totalorder %s257, %s259
      %p263 = scmp.eq.s32.totalorder %s29, 0
      %p264 = por %p262, %p263
      %p265 = scmp.ne.s32.totalorder %s257, %s259
      %p266 = scmp.eq.s32.totalorder %s34, 1
      %p267 = por %p265, %p266
      %p268 = scmp.ne.s32.totalorder %s259, %s260
      %p269 = scmp.eq.s32.totalorder %s34, 0
      %p270 = por %p268, %p269
      %p271 = scmp.ne.s32.totalorder %s259, %s260
      %p272 = scmp.eq.s32.totalorder %s35, 1
      %p273 = por %p271, %p272
      %p275 = scmp.ne.s32.totalorder %s260, %s274
      %p276 = scmp.eq.s32.totalorder %s35, 0
      %p277 = por %p275, %p276
      %s279 = sadd.s32 %s278, 1
      %p282 = scmp.eq.s32.totalorder %s29, 1
      %p283 = scmp.ne.s32.totalorder %s278, %s280
      %p284 = scmp.eq.s32.totalorder %s29, 0
      %p285 = por %p283, %p284
      %p286 = scmp.ne.s32.totalorder %s278, %s280
      %p287 = scmp.eq.s32.totalorder %s34, 1
      %p288 = por %p286, %p287
      %p289 = scmp.ne.s32.totalorder %s280, %s281
      %p290 = scmp.eq.s32.totalorder %s34, 0
      %p291 = por %p289, %p290
      %p292 = scmp.ne.s32.totalorder %s280, %s281
      %p293 = scmp.eq.s32.totalorder %s35, 1
      %p294 = por %p292, %p293
      %p296 = scmp.ne.s32.totalorder %s281, %s295
      %p297 = scmp.eq.s32.totalorder %s35, 0
      %p298 = por %p296, %p297
      %s299 = ssub.s32 %s29, %s36
      %p300 = scmp.eq.s32.totalorder %s299, 0
      %s302 = sadd.s32 %s301, 1
      %s303 = scalar_select %p300, %s301, %s302
      %p306 = pneg %p300
      %p307 = scmp.eq.s32.totalorder %s29, 1
      %p308 = por %p306, %p307
      %p309 = scmp.ne.s32.totalorder %s301, %s304
      %p310 = scmp.eq.s32.totalorder %s29, 0
      %p311 = por %p309, %p310
      %p312 = scmp.ne.s32.totalorder %s301, %s304
      %p313 = scmp.eq.s32.totalorder %s34, 1
      %p314 = por %p312, %p313
      %p315 = scmp.ne.s32.totalorder %s304, %s305
      %p316 = scmp.eq.s32.totalorder %s34, 0
      %p317 = por %p315, %p316
      %p318 = scmp.ne.s32.totalorder %s304, %s305
      %p319 = scmp.eq.s32.totalorder %s35, 1
      %p320 = por %p318, %p319
      %p322 = scmp.ne.s32.totalorder %s305, %s321
      %p323 = scmp.eq.s32.totalorder %s35, 0
      %p324 = por %p322, %p323
      %s325 = ssub.s32 %s29, %s36
      %p326 = scmp.eq.s32.totalorder %s325, 0
      %s328 = sadd.s32 %s327, 1
      %s329 = scalar_select %p326, %s327, %s328
      %p332 = pneg %p326
      %p333 = scmp.eq.s32.totalorder %s29, 1
      %p334 = por %p332, %p333
      %p335 = scmp.ne.s32.totalorder %s327, %s330
      %p336 = scmp.eq.s32.totalorder %s29, 0
      %p337 = por %p335, %p336
      %p338 = scmp.ne.s32.totalorder %s327, %s330
      %p339 = scmp.eq.s32.totalorder %s34, 1
      %p340 = por %p338, %p339
      %p341 = scmp.ne.s32.totalorder %s330, %s331
      %p342 = scmp.eq.s32.totalorder %s34, 0
      %p343 = por %p341, %p342
      %p344 = scmp.ne.s32.totalorder %s330, %s331
      %p345 = scmp.eq.s32.totalorder %s35, 1
      %p346 = por %p344, %p345
      %p348 = scmp.ne.s32.totalorder %s331, %s347
      %p349 = scmp.eq.s32.totalorder %s35, 0
      %p350 = por %p348, %p349
      %p351 = scmp.le.s32.totalorder 1, %s29
      %p352 = scmp.lt.s32.totalorder %s29, 3
      %p353 = pnand %p351, %p352
      %p354 = pneg %p353
      // Predicated region
      $region9: #{tpu_custom_call.1} parent=5 // pred_check
        _
      $region10: #{tpu_custom_call.1} parent=5 // pred_check_branch
        %356 = sbr.rel (%p353) target = $region12
      $region11: #{tpu_custom_call.1} parent=5 // pred_region
        %s357 = ssub.s32 %s29, 1
        // Predicated region
        $region13: #{tpu_custom_call.1} parent=11 // pred_check
          %p358 = pneg %p102
        $region14: #{tpu_custom_call.1} parent=11 // pred_check_branch
          %360 = sbr.rel (%p358) target = $region16
        $region15: #{tpu_custom_call.1} parent=11 // pred_region
          _
        $region16: #{tpu_custom_call.1} parent=11 // pred_fallthru
          _
        // Predicated region
        $region17: #{tpu_custom_call.1} parent=11 // pred_check
          %p361 = pneg %p123
        $region18: #{tpu_custom_call.1} parent=11 // pred_check_branch
          %363 = sbr.rel (%p361) target = $region20
        $region19: #{tpu_custom_call.1} parent=11 // pred_region
          _
        $region20: #{tpu_custom_call.1} parent=11 // pred_fallthru
          _
        // Predicated region
        $region21: #{tpu_custom_call.1} parent=11 // pred_check
          %p364 = pneg %p144
        $region22: #{tpu_custom_call.1} parent=11 // pred_check_branch
          %366 = sbr.rel (%p364) target = $region24
        $region23: #{tpu_custom_call.1} parent=11 // pred_region
          _
        $region24: #{tpu_custom_call.1} parent=11 // pred_fallthru
          _
        // Predicated region
        $region25: #{tpu_custom_call.1} parent=11 // pred_check
          %p367 = pneg %p165
        $region26: #{tpu_custom_call.1} parent=11 // pred_check_branch
          %369 = sbr.rel (%p367) target = $region28
        $region27: #{tpu_custom_call.1} parent=11 // pred_region
          _
        $region28: #{tpu_custom_call.1} parent=11 // pred_fallthru
          _
        // Predicated region
        $region29: #{tpu_custom_call.1} parent=11 // pred_check
          %p370 = pneg %p186
        $region30: #{tpu_custom_call.1} parent=11 // pred_check_branch
          %372 = sbr.rel (%p370) target = $region32
        $region31: #{tpu_custom_call.1} parent=11 // pred_region
          _
        $region32: #{tpu_custom_call.1} parent=11 // pred_fallthru
          _
        // Predicated region
        $region33: #{tpu_custom_call.1} parent=11 // pred_check
          %p373 = pneg %p207
        $region34: #{tpu_custom_call.1} parent=11 // pred_check_branch
          %375 = sbr.rel (%p373) target = $region36
        $region35: #{tpu_custom_call.1} parent=11 // pred_region
          _
        $region36: #{tpu_custom_call.1} parent=11 // pred_fallthru
          _
        // Predicated region
        $region37: #{tpu_custom_call.1} parent=11 // pred_check
          %p376 = pneg %p228
        $region38: #{tpu_custom_call.1} parent=11 // pred_check_branch
          %378 = sbr.rel (%p376) target = $region40
        $region39: #{tpu_custom_call.1} parent=11 // pred_region
          _
        $region40: #{tpu_custom_call.1} parent=11 // pred_fallthru
          _
        // Predicated region
        $region41: #{tpu_custom_call.1} parent=11 // pred_check
          %p379 = pneg %p249
        $region42: #{tpu_custom_call.1} parent=11 // pred_check_branch
          %381 = sbr.rel (%p379) target = $region44
        $region43: #{tpu_custom_call.1} parent=11 // pred_region
          _
        $region44: #{tpu_custom_call.1} parent=11 // pred_fallthru
          _
        // Predicated region
        $region45: #{tpu_custom_call.1} parent=11 // pred_check
          %p382 = pneg %p270
        $region46: #{tpu_custom_call.1} parent=11 // pred_check_branch
          %384 = sbr.rel (%p382) target = $region48
        $region47: #{tpu_custom_call.1} parent=11 // pred_region
          _
        $region48: #{tpu_custom_call.1} parent=11 // pred_fallthru
          _
        // Predicated region
        $region49: #{tpu_custom_call.1} parent=11 // pred_check
          %p385 = pneg %p291
        $region50: #{tpu_custom_call.1} parent=11 // pred_check_branch
          %387 = sbr.rel (%p385) target = $region52
        $region51: #{tpu_custom_call.1} parent=11 // pred_region
          _
        $region52: #{tpu_custom_call.1} parent=11 // pred_fallthru
          _
      $region12: #{tpu_custom_call.1} parent=5 // pred_fallthru
        _
      %p388 = scmp.lt.s32.totalorder %s29, 2
      // Predicated region
      $region53: #{tpu_custom_call.1} parent=5 // pred_check
        %p389 = pneg %p388
      $region54: #{tpu_custom_call.1} parent=5 // pred_check_branch
        %391 = sbr.rel (%p389) target = $region56
      $region55: #{tpu_custom_call.1} parent=5 // pred_region
        // Predicated region
        $region57: #{tpu_custom_call.1} parent=55 // pred_check
          %p392 = pneg %p49
        $region58: #{tpu_custom_call.1} parent=55 // pred_check_branch
          %394 = sbr.rel (%p392) target = $region60
        $region59: #{tpu_custom_call.1} parent=55 // pred_region
          %s395 = sand.u32 %s39, 1
          %s396 = scalar_lea.sflag [#allocation3], %s395
          %s397 = sand.u32 %s39, 1
          %s398 = smul.addr %s397, 8
          %s399 = scalar_lea.vmem [#allocation2], %s398
          %s401 = ssub.s32 128, 128
          %402 = vsyncadd %s396, %s401
          %s403 = smul.addr %s29, 128
          %s404 = scalar_lea.hbm %s0, %s403
          %s406 = sshll.u32 %s399, 4
          %s407 = int_to_ptr.vmem [resolvable:$true] %s406
          %409 = dma.hbm_to_vmem [thread:$0]  %s404, 128, %s407, %s396
        $region60: #{tpu_custom_call.1} parent=55 // pred_fallthru
          _
        // Predicated region
        $region61: #{tpu_custom_call.1} parent=55 // pred_check
          %p410 = pneg %p75
        $region62: #{tpu_custom_call.1} parent=55 // pred_check_branch
          %412 = sbr.rel (%p410) target = $region64
        $region63: #{tpu_custom_call.1} parent=55 // pred_region
          #allocation9 [shape = 'u32[6]{0}', space=smem, size = 0x18, scoped, tag = 'DMA stride descriptor']
          %s413 = sand.u32 %s65, 1
          %s414 = scalar_lea.sflag [#allocation6], %s413
          %s415 = sand.u32 %s65, 1
          %s416 = smul.addr %s415, 64
          %s417 = scalar_lea.vmem [#allocation5], %s416
          %s418 = smul.u32 8, %s29
          %s420 = ssub.s32 1024, 1024
          %421 = vsyncadd %s414, %s420
          %s422 = smul.addr %s418, 64
          %s423 = scalar_lea.hbm %s1, %s422
          %s425 = sshll.u32 1, 14
          %s426 = sxor.u32 4294967295, %s425
          %s428 = sld [smem:[#allocation0]]
          %s429 = sadd.s32 2, %s428
          %s431 = sshll.u32 7, 26
          %s432 = sxor.u32 4294967295, %s431
          %s433 = sand.u32 0, %s432
          %s434 = sshll.u32 %s429, 26
          %s435 = sor.u32 %s433, %s434
          %s436 = sshll.u32 %s417, 4
          %s437 = int_to_ptr.vmem [resolvable:$true] %s436
          %443 = sst [smem:[#allocation9]] 1024
          %s444 = scalar_lea.smem [#allocation9], 1
          %445 = sst [smem:[%s444]] 512
          %s446 = scalar_lea.smem [#allocation9], 2
          %447 = sst [smem:[%s446]] 8
          %s448 = scalar_lea.smem [#allocation9], 3
          %449 = sst [smem:[%s448]] 64
          %s450 = scalar_lea.smem [#allocation9], 4
          %451 = sst [smem:[%s450]] 64
          %s452 = scalar_lea.smem [#allocation9], 5
          %453 = sst [smem:[%s452]] 4
          %455 = dma.general %s423, 1024, %s437, %s414, [#allocation8], [#allocation9], %s435, 0
        $region64: #{tpu_custom_call.1} parent=55 // pred_fallthru
          _
      $region56: #{tpu_custom_call.1} parent=5 // pred_fallthru
        _
      %p456 = scmp.le.s32.totalorder 1, %s29
      %p457 = scmp.lt.s32.totalorder %s29, 3
      %p458 = pnand %p456, %p457
      %p459 = pneg %p458
      // Predicated region
      $region65: #{tpu_custom_call.1} parent=5 // pred_check
        _
      $region66: #{tpu_custom_call.1} parent=5 // pred_check_branch
        %461 = sbr.rel (%p458) target = $region68
      $region67: #{tpu_custom_call.1} parent=5 // pred_region
        %s462 = ssub.s32 %s29, 1
        %s463 = sand.u32 %s42, 1
        %s464 = scalar_lea.sflag [#allocation3], %s463
        %s465 = sand.u32 %s42, 1
        %s466 = smul.addr %s465, 8
        %s467 = scalar_lea.vmem [#allocation2], %s466
        // Predicated region
        $region69: #{tpu_custom_call.1} parent=67 // pred_check
          %p468 = pneg %p55
        $region70: #{tpu_custom_call.1} parent=67 // pred_check_branch
          %470 = sbr.rel (%p468) target = $region72
        $region71: #{tpu_custom_call.1} parent=67 // pred_region
          %471 = dma.done %s464, 128
        $region72: #{tpu_custom_call.1} parent=67 // pred_fallthru
          _
        %s472 = sand.u32 %s68, 1
        %s473 = scalar_lea.sflag [#allocation6], %s472
        %s474 = sand.u32 %s68, 1
        %s475 = smul.addr %s474, 64
        %s476 = scalar_lea.vmem [#allocation5], %s475
        // Predicated region
        $region73: #{tpu_custom_call.1} parent=67 // pred_check
          %p477 = pneg %p81
        $region74: #{tpu_custom_call.1} parent=67 // pred_check_branch
          %479 = sbr.rel (%p477) target = $region76
        $region75: #{tpu_custom_call.1} parent=67 // pred_region
          %480 = dma.done %s473, 1024
        $region76: #{tpu_custom_call.1} parent=67 // pred_fallthru
          _
        %s481 = sand.u32 %s42, 1
        %s482 = scalar_lea.sflag [#allocation3], %s481
        %s483 = sand.u32 %s42, 1
        %s484 = smul.addr %s483, 8
        %s485 = scalar_lea.vmem [#allocation2], %s484
        %p486 = pneg %p55
        %p487 = pneg %p52
        %s488 = sand.u32 %s68, 1
        %s489 = scalar_lea.sflag [#allocation6], %s488
        %s490 = sand.u32 %s68, 1
        %s491 = smul.addr %s490, 64
        %s492 = scalar_lea.vmem [#allocation5], %s491
        %p493 = pneg %p81
        %p494 = pneg %p78
        %p495 = pneg %p102
        %p496 = pneg %p99
        %p497 = pneg %p123
        %p498 = pneg %p120
        %p499 = pneg %p144
        %p500 = pneg %p141
        %p501 = pneg %p165
        %p502 = pneg %p162
        %p503 = pneg %p186
        %p504 = pneg %p183
        %p505 = pneg %p207
        %p506 = pneg %p204
        %p507 = pneg %p228
        %p508 = pneg %p225
        %p509 = pneg %p249
        %p510 = pneg %p246
        %p511 = pneg %p270
        %p512 = pneg %p267
        %p513 = pneg %p291
        %p514 = pneg %p288
        %p515 = pneg %p317
        %p516 = pneg %p314
        %s517 = sand.u32 %s304, 1
        %s518 = scalar_lea.sflag [#allocation4], %s517
        %s519 = sand.u32 %s304, 1
        %s520 = smul.addr %s519, 8
        %s521 = scalar_lea.vmem [#allocation7], %s520
        %p522 = pneg %p343
        %p523 = pneg %p340
        %p524 = scmp.lt.s32.totalorder %s34, 1
        %s525 = scalar_select %p524, %s34, 1
        %s526 = smul.addr %s525, 8
        %s527 = scalar_lea.vmem %s13, %s526
        %s528 = smul.u32 8, %s34
        %p529 = scmp.lt.s32.totalorder %s34, 1
        %s530 = scalar_select %p529, %s34, 1
        %s531 = smul.addr %s530, 8
        %s532 = scalar_lea.vmem %s13, %s531
        %v534 = vld [vmem:[%s467] sm:$0xff]
        %v535 = vld [vmem:[%s2] sm:$0xf]
        %v536 = vld [vmem:[%s2 + $0x4] sm:$0xf]
        %v537 = vld [vmem:[%s2 + $0x8] sm:$0xf]
        %v538 = vld [vmem:[%s2 + $0xc] sm:$0xf]
        %v539 = vld [vmem:[%s2 + $0x10] sm:$0xf]
        %v540 = vld [vmem:[%s2 + $0x14] sm:$0xf]
        %v541 = vld [vmem:[%s2 + $0x18] sm:$0xf]
        %v542 = vld [vmem:[%s2 + $0x1c] sm:$0xf]
        %v543 = vld [vmem:[%s3] sm:$0x1]
        %v544 = vld [vmem:[%s4] sm:$0xff]
        %v545 = vld [vmem:[%s4 + $0x8] sm:$0xff]
        %v546 = vld [vmem:[%s4 + $0x10] sm:$0xff]
        %v547 = vld [vmem:[%s4 + $0x18] sm:$0xff]
        %v548 = vld [vmem:[%s5] sm:$0x1]
        %v549 = vld [vmem:[%s6] sm:$0xff]
        %v550 = vld [vmem:[%s6 + $0x8] sm:$0xff]
        %v551 = vld [vmem:[%s6 + $0x10] sm:$0xff]
        %v552 = vld [vmem:[%s6 + $0x18] sm:$0xff]
        %v553 = vld [vmem:[%s6 + $0x20] sm:$0xff]
        %v554 = vld [vmem:[%s6 + $0x28] sm:$0xff]
        %v555 = vld [vmem:[%s6 + $0x30] sm:$0xff]
        %v556 = vld [vmem:[%s6 + $0x38] sm:$0xff]
        %v557 = vld [vmem:[%s476] sm:$0xf]
        %v558 = vld [vmem:[%s476 + $0x4] sm:$0xf]
        %v559 = vld [vmem:[%s476 + $0x8] sm:$0xf]
        %v560 = vld [vmem:[%s476 + $0xc] sm:$0xf]
        %v561 = vld [vmem:[%s476 + $0x10] sm:$0xf]
        %v562 = vld [vmem:[%s476 + $0x14] sm:$0xf]
        %v563 = vld [vmem:[%s476 + $0x18] sm:$0xf]
        %v564 = vld [vmem:[%s476 + $0x1c] sm:$0xf]
        %v565 = vld [vmem:[%s476 + $0x20] sm:$0xf]
        %v566 = vld [vmem:[%s476 + $0x24] sm:$0xf]
        %v567 = vld [vmem:[%s476 + $0x28] sm:$0xf]
        %v568 = vld [vmem:[%s476 + $0x2c] sm:$0xf]
        %v569 = vld [vmem:[%s476 + $0x30] sm:$0xf]
        %v570 = vld [vmem:[%s476 + $0x34] sm:$0xf]
        %v571 = vld [vmem:[%s476 + $0x38] sm:$0xf]
        %v572 = vld [vmem:[%s476 + $0x3c] sm:$0xf]
        %v574 = vlaneseq
        %v575 = vshrl.u32 %v574, 7
        %v576 = vsub.s32 0, %v575
        %v577 = vrot.slane %v543, %v576
        %v595 = vunpack.c.l.b16 %v557
        %v596 = vunpack.c.l.b16 %v558
        %v597 = vunpack.c.l.b16 %v559
        %v598 = vunpack.c.l.b16 %v560
        %v599 = vunpack.c.l.b16 %v561
        %v600 = vunpack.c.l.b16 %v562
        %v601 = vunpack.c.l.b16 %v563
        %v602 = vunpack.c.l.b16 %v564
        %v603 = vunpack.c.l.b16 %v565
        %v604 = vunpack.c.l.b16 %v566
        %v605 = vunpack.c.l.b16 %v567
        %v606 = vunpack.c.l.b16 %v568
        %v607 = vunpack.c.l.b16 %v569
        %v608 = vunpack.c.l.b16 %v570
        %v609 = vunpack.c.l.b16 %v571
        %v610 = vunpack.c.l.b16 %v572
        %v611 = vpack.c.b16 %v596, %v595
        %v612 = vpack.c.b16 %v598, %v597
        %v613 = vpack.c.b16 %v600, %v599
        %v614 = vpack.c.b16 %v602, %v601
        %v615 = vpack.c.b16 %v604, %v603
        %v616 = vpack.c.b16 %v606, %v605
        %v617 = vpack.c.b16 %v608, %v607
        %v618 = vpack.c.b16 %v610, %v609
        %v627 = vunpack.c.l.b16 %v535
        %v628 = vunpack.c.l.b16 %v536
        %v629 = vunpack.c.l.b16 %v537
        %v630 = vunpack.c.l.b16 %v538
        %v631 = vunpack.c.l.b16 %v539
        %v632 = vunpack.c.l.b16 %v540
        %v633 = vunpack.c.l.b16 %v541
        %v634 = vunpack.c.l.b16 %v542
        %v635 = vpack.c.b16 %v628, %v627
        %v636 = vpack.c.b16 %v630, %v629
        %v637 = vpack.c.b16 %v632, %v631
        %v638 = vpack.c.b16 %v634, %v633
        %vm643 = vcmask 523264
        %v645 = vsel %vm643, %v611, 0
        %v648 = vsel %vm643, %v612, 0
        %v651 = vsel %vm643, %v613, 0
        %v654 = vsel %vm643, %v614, 0
        %v657 = vsel %vm643, %v615, 0
        %v660 = vsel %vm643, %v616, 0
        %v663 = vsel %vm643, %v617, 0
        %v666 = vsel %vm643, %v618, 0
        %668 = vmatprep.subr.bf16.mxu0 0
        %669 = vmatpush1.bf16.msra.mxu0 %v635
        %670 = vmatprep.subr.bf16.mxu0 0
        %671 = vmatpush1.bf16.msra.mxu0 %v636
        %672 = vmatprep.subr.bf16.mxu0 0
        %673 = vmatpush1.bf16.msra.mxu0 %v637
        %674 = vmatprep.subr.bf16.mxu0 0
        %675 = vmatpush1.bf16.msra.mxu0 %v638
        %676 = vmatprep.subr.bf16.mxu0 0
        %677 = vmatpush1.bf16.msra.mxu0 0
        %678 = vmatprep.subr.bf16.mxu0 0
        %679 = vmatpush1.bf16.msra.mxu0 0
        %680 = vmatprep.subr.bf16.mxu0 0
        %681 = vmatpush1.bf16.msra.mxu0 0
        %682 = vmatprep.subr.bf16.mxu0 0
        %683 = vmatpush1.bf16.msra.mxu0 0
        %684 = vmatprep.subr.bf16.mxu0 0
        %685 = vmatpush1.bf16.msra.mxu0 0
        %686 = vmatprep.subr.bf16.mxu0 0
        %687 = vmatpush1.bf16.msra.mxu0 0
        %688 = vmatprep.subr.bf16.mxu0 0
        %689 = vmatpush1.bf16.msra.mxu0 0
        %690 = vmatprep.subr.bf16.mxu0 0
        %691 = vmatpush1.bf16.msra.mxu0 0
        %692 = vmatprep.subr.bf16.mxu0 0
        %693 = vmatpush1.bf16.msra.mxu0 0
        %694 = vmatprep.subr.bf16.mxu0 0
        %695 = vmatpush1.bf16.msra.mxu0 0
        %696 = vmatprep.subr.bf16.mxu0 0
        %697 = vmatpush1.bf16.msra.mxu0 0
        %698 = vmatprep.subr.bf16.mxu0 0
        %699 = vmatpush1.bf16.msra.mxu0 0
        %700 = vmatprep.mubr.bf16.mxu0 0
        %701 = vmatmul.mubr.bf16.gmra.mrb[0].mxu0 %v645
        %v702 = vpop.f32.mrb[0].mxu0
        %v703 = vadd.f32 %v577, %v702
        %v704 = vpop.f32.mrb[0].mxu0
        %v705 = vpop.f32.mrb[0].mxu0
        %v706 = vadd.f32 %v577, %v705
        %v707 = vpop.f32.mrb[0].mxu0
        %708 = vmatprep.mubr.bf16.mxu0 0
        %709 = vmatmul.mubr.bf16.gmra.mrb[0].mxu0 %v648
        %v710 = vpop.f32.mrb[0].mxu0
        %v711 = vadd.f32 %v577, %v710
        %v712 = vpop.f32.mrb[0].mxu0
        %v713 = vpop.f32.mrb[0].mxu0
        %v714 = vadd.f32 %v577, %v713
        %v715 = vpop.f32.mrb[0].mxu0
        %716 = vmatprep.mubr.bf16.mxu0 0
        %717 = vmatmul.mubr.bf16.gmra.mrb[0].mxu0 %v651
        %v718 = vpop.f32.mrb[0].mxu0
        %v719 = vadd.f32 %v577, %v718
        %v720 = vpop.f32.mrb[0].mxu0
        %v721 = vpop.f32.mrb[0].mxu0
        %v722 = vadd.f32 %v577, %v721
        %v723 = vpop.f32.mrb[0].mxu0
        %724 = vmatprep.mubr.bf16.mxu0 0
        %725 = vmatmul.mubr.bf16.gmra.mrb[0].mxu0 %v654
        %v726 = vpop.f32.mrb[0].mxu0
        %v727 = vadd.f32 %v577, %v726
        %v728 = vpop.f32.mrb[0].mxu0
        %v729 = vpop.f32.mrb[0].mxu0
        %v730 = vadd.f32 %v577, %v729
        %v731 = vpop.f32.mrb[0].mxu0
        %732 = vmatprep.mubr.bf16.mxu0 0
        %733 = vmatmul.mubr.bf16.gmra.mrb[0].mxu0 %v657
        %v734 = vpop.f32.mrb[0].mxu0
        %v735 = vadd.f32 %v577, %v734
        %v736 = vpop.f32.mrb[0].mxu0
        %v737 = vpop.f32.mrb[0].mxu0
        %v738 = vadd.f32 %v577, %v737
        %v739 = vpop.f32.mrb[0].mxu0
        %740 = vmatprep.mubr.bf16.mxu0 0
        %741 = vmatmul.mubr.bf16.gmra.mrb[0].mxu0 %v660
        %v742 = vpop.f32.mrb[0].mxu0
        %v743 = vadd.f32 %v577, %v742
        %v744 = vpop.f32.mrb[0].mxu0
        %v745 = vpop.f32.mrb[0].mxu0
        %v746 = vadd.f32 %v577, %v745
        %v747 = vpop.f32.mrb[0].mxu0
        %748 = vmatprep.mubr.bf16.mxu0 0
        %749 = vmatmul.mubr.bf16.gmra.mrb[0].mxu0 %v663
        %v750 = vpop.f32.mrb[0].mxu0
        %v751 = vadd.f32 %v577, %v750
        %v752 = vpop.f32.mrb[0].mxu0
        %v753 = vpop.f32.mrb[0].mxu0
        %v754 = vadd.f32 %v577, %v753
        %v755 = vpop.f32.mrb[0].mxu0
        %756 = vmatprep.mubr.bf16.mxu0 0
        %757 = vmatmul.mubr.bf16.gmra.mrb[0].mxu0 %v666
        %v758 = vpop.f32.mrb[0].mxu0
        %v759 = vadd.f32 %v577, %v758
        %v760 = vpop.f32.mrb[0].mxu0
        %v761 = vpop.f32.mrb[0].mxu0
        %v762 = vadd.f32 %v577, %v761
        %v763 = vpop.f32.mrb[0].mxu0
        %764 = vdwg.mxu0
        %v765 = vmax.f32 %v703, 0.0
        %v766 = vmax.f32 %v706, 0.0
        %v767 = vmax.f32 %v711, 0.0
        %v768 = vmax.f32 %v714, 0.0
        %v769 = vmax.f32 %v719, 0.0
        %v770 = vmax.f32 %v722, 0.0
        %v771 = vmax.f32 %v727, 0.0
        %v772 = vmax.f32 %v730, 0.0
        %v773 = vmax.f32 %v735, 0.0
        %v774 = vmax.f32 %v738, 0.0
        %v775 = vmax.f32 %v743, 0.0
        %v776 = vmax.f32 %v746, 0.0
        %v777 = vmax.f32 %v751, 0.0
        %v778 = vmax.f32 %v754, 0.0
        %v779 = vmax.f32 %v759, 0.0
        %v780 = vmax.f32 %v762, 0.0
        %v782 = vcombine.high %v534, %v534
        %v784 = vunpack.c.l.s4 1966171168
        %v785 = vunpack.c.0.s8 %v784
        %v786 = vlaneseq
        %v787 = vshrl.u32 %v786, 7
        %v788 = vsub.s32 %v785, %v787
        %v789 = vrot.slane %v534, %v788
        %v791 = vunpack.c.l.s4 1966171168
        %v792 = vunpack.c.0.s8 %v791
        %v793 = vlaneseq
        %v794 = vshrl.u32 %v793, 7
        %v795 = vsub.s32 %v792, %v794
        %v796 = vrot.slane %v782, %v795
        %v797 = vcombine.high %v789, %v789
        %v798 = vcombine.high %v796, %v796
        %v800 = vunpack.c.l.s4 1966171168
        %v801 = vunpack.c.0.s8 %v800
        %v802 = vlaneseq
        %v803 = vshrl.u32 %v802, 7
        %v804 = vsub.s32 %v801, %v803
        %v805 = vrot.slane %v789, %v804
        %v807 = vunpack.c.l.s4 1966171168
        %v808 = vunpack.c.0.s8 %v807
        %v809 = vlaneseq
        %v810 = vshrl.u32 %v809, 7
        %v811 = vsub.s32 %v808, %v810
        %v812 = vrot.slane %v796, %v811
        %v814 = vunpack.c.l.s4 1966171168
        %v815 = vunpack.c.0.s8 %v814
        %v816 = vlaneseq
        %v817 = vshrl.u32 %v816, 7
        %v818 = vsub.s32 %v815, %v817
        %v819 = vrot.slane %v797, %v818
        %v821 = vunpack.c.l.s4 1966171168
        %v822 = vunpack.c.0.s8 %v821
        %v823 = vlaneseq
        %v824 = vshrl.u32 %v823, 7
        %v825 = vsub.s32 %v822, %v824
        %v826 = vrot.slane %v798, %v825
        %v827 = vcombine.high %v805, %v805
        %v828 = vcombine.high %v812, %v812
        %v829 = vcombine.high %v819, %v819
        %v830 = vcombine.high %v826, %v826
        %v831 = vlaneseq
        %v832 = vshrl.u32 %v831, 7
        %v833 = vsub.s32 0, %v832
        %v834 = vrot.slane %v805, %v833
        %v835 = vlaneseq
        %v836 = vshrl.u32 %v835, 7
        %v837 = vsub.s32 0, %v836
        %v838 = vrot.slane %v819, %v837
        %v839 = vlaneseq
        %v840 = vshrl.u32 %v839, 7
        %v841 = vsub.s32 0, %v840
        %v842 = vrot.slane %v827, %v841
        %v843 = vlaneseq
        %v844 = vshrl.u32 %v843, 7
        %v845 = vsub.s32 0, %v844
        %v846 = vrot.slane %v829, %v845
        %v847 = vlaneseq
        %v848 = vshrl.u32 %v847, 7
        %v849 = vsub.s32 0, %v848
        %v850 = vrot.slane %v812, %v849
        %v851 = vlaneseq
        %v852 = vshrl.u32 %v851, 7
        %v853 = vsub.s32 0, %v852
        %v854 = vrot.slane %v826, %v853
        %v855 = vlaneseq
        %v856 = vshrl.u32 %v855, 7
        %v857 = vsub.s32 0, %v856
        %v858 = vrot.slane %v828, %v857
        %v859 = vlaneseq
        %v860 = vshrl.u32 %v859, 7
        %v861 = vsub.s32 0, %v860
        %v862 = vrot.slane %v830, %v861
        %v871 = vmul.f32 %v765, %v834
        %v872 = vmul.f32 %v766, %v838
        %v873 = vmul.f32 %v767, %v842
        %v874 = vmul.f32 %v768, %v846
        %v875 = vmul.f32 %v769, %v850
        %v876 = vmul.f32 %v770, %v854
        %v877 = vmul.f32 %v771, %v858
        %v878 = vmul.f32 %v772, %v862
        %vm879 = vcmask 261120
        %v880 = vsel %vm879, %v871, 0.0
        %881 = vadd.xlane.f32.xlu0 %v880
        %v882 = vpop.xlane.xlu0 %881
        %v883 = vsel %vm879, %v872, 0.0
        %884 = vadd.xlane.f32.xlu0 %v883
        %v885 = vpop.xlane.xlu0 %884
        %v886 = vsel %vm879, %v873, 0.0
        %887 = vadd.xlane.f32.xlu0 %v886
        %v888 = vpop.xlane.xlu0 %887
        %v889 = vsel %vm879, %v874, 0.0
        %890 = vadd.xlane.f32.xlu0 %v889
        %v891 = vpop.xlane.xlu0 %890
        %v892 = vsel %vm879, %v875, 0.0
        %893 = vadd.xlane.f32.xlu0 %v892
        %v894 = vpop.xlane.xlu0 %893
        %v895 = vsel %vm879, %v876, 0.0
        %896 = vadd.xlane.f32.xlu0 %v895
        %v897 = vpop.xlane.xlu0 %896
        %v898 = vsel %vm879, %v877, 0.0
        %899 = vadd.xlane.f32.xlu0 %v898
        %v900 = vpop.xlane.xlu0 %899
        %v901 = vsel %vm879, %v878, 0.0
        %902 = vadd.xlane.f32.xlu0 %v901
        %v903 = vpop.xlane.xlu0 %902
        %v912 = vlaneseq
        %v913 = vand.u32 %v912, 127
        %v914 = vlaneseq
        %v915 = vshrl.u32 %v914, 7
        %v916 = vsub.s32 %v913, %v915
        %v917 = vrot.slane %v882, %v916
        %v918 = vlaneseq
        %v919 = vshrl.u32 %v918, 7
        %v920 = vsub.s32 %v913, %v919
        %v921 = vrot.slane %v885, %v920
        %v922 = vlaneseq
        %v923 = vshrl.u32 %v922, 7
        %v924 = vsub.s32 %v913, %v923
        %v925 = vrot.slane %v888, %v924
        %v926 = vlaneseq
        %v927 = vshrl.u32 %v926, 7
        %v928 = vsub.s32 %v913, %v927
        %v929 = vrot.slane %v891, %v928
        %v930 = vlaneseq
        %v931 = vshrl.u32 %v930, 7
        %v932 = vsub.s32 %v913, %v931
        %v933 = vrot.slane %v894, %v932
        %v934 = vlaneseq
        %v935 = vshrl.u32 %v934, 7
        %v936 = vsub.s32 %v913, %v935
        %v937 = vrot.slane %v897, %v936
        %v938 = vlaneseq
        %v939 = vshrl.u32 %v938, 7
        %v940 = vsub.s32 %v913, %v939
        %v941 = vrot.slane %v900, %v940
        %v942 = vlaneseq
        %v943 = vshrl.u32 %v942, 7
        %v944 = vsub.s32 %v913, %v943
        %v945 = vrot.slane %v903, %v944
        %vm946 = vcmask 1041409
        %v947 = vsel %vm946, %v921, %v917
        %vm948 = vcmask 1042434
        %v949 = vsel %vm948, %v925, %v947
        %vm950 = vcmask 1043459
        %v951 = vsel %vm950, %v929, %v949
        %vm952 = vcmask 1044484
        %v953 = vsel %vm952, %v933, %v951
        %vm954 = vcmask 1045509
        %v955 = vsel %vm954, %v937, %v953
        %vm956 = vcmask 1046534
        %v957 = vsel %vm956, %v941, %v955
        %vm958 = vcmask 1047559
        %v959 = vsel %vm958, %v945, %v957
        %vm961 = vcmask 64512
        %v962 = vsel %vm961, %v959, -inf
        %963 = vmax.xlane.f32.xlu0 %v962
        %v964 = vpop.xlane.xlu0 %963
        %v966 = vlaneseq
        %v967 = vshrl.u32 %v966, 7
        %v968 = vsub.s32 0, %v967
        %v969 = vrot.slane %v964, %v968
        %v970 = vlaneseq
        %v971 = vshrl.u32 %v970, 7
        %v972 = vsub.s32 1, %v971
        %v973 = vrot.slane %v964, %v972
        %v974 = vlaneseq
        %v975 = vshrl.u32 %v974, 7
        %v976 = vsub.s32 2, %v975
        %v977 = vrot.slane %v964, %v976
        %v978 = vlaneseq
        %v979 = vshrl.u32 %v978, 7
        %v980 = vsub.s32 3, %v979
        %v981 = vrot.slane %v964, %v980
        %v982 = vlaneseq
        %v983 = vshrl.u32 %v982, 7
        %v984 = vsub.s32 4, %v983
        %v985 = vrot.slane %v964, %v984
        %v986 = vlaneseq
        %v987 = vshrl.u32 %v986, 7
        %v988 = vsub.s32 5, %v987
        %v989 = vrot.slane %v964, %v988
        %v990 = vlaneseq
        %v991 = vshrl.u32 %v990, 7
        %v992 = vsub.s32 6, %v991
        %v993 = vrot.slane %v964, %v992
        %v994 = vlaneseq
        %v995 = vshrl.u32 %v994, 7
        %v996 = vsub.s32 7, %v995
        %v997 = vrot.slane %v964, %v996
        %v1006 = vsub.f32 %v882, %v969
        %v1007 = vsub.f32 %v885, %v973
        %v1008 = vsub.f32 %v888, %v977
        %v1009 = vsub.f32 %v891, %v981
        %v1010 = vsub.f32 %v894, %v985
        %v1011 = vsub.f32 %v897, %v989
        %v1012 = vsub.f32 %v900, %v993
        %v1013 = vsub.f32 %v903, %v997
        %v1014 = vmul.f32 %v1006, 1.442695
        %v1015 = vpow.pop %v1014
        %v1016 = vmul.f32 %v1007, 1.442695
        %v1017 = vpow.pop %v1016
        %v1018 = vmul.f32 %v1008, 1.442695
        %v1019 = vpow.pop %v1018
        %v1020 = vmul.f32 %v1009, 1.442695
        %v1021 = vpow.pop %v1020
        %v1022 = vmul.f32 %v1010, 1.442695
        %v1023 = vpow.pop %v1022
        %v1024 = vmul.f32 %v1011, 1.442695
        %v1025 = vpow.pop %v1024
        %v1026 = vmul.f32 %v1012, 1.442695
        %v1027 = vpow.pop %v1026
        %v1028 = vmul.f32 %v1013, 1.442695
        %v1029 = vpow.pop %v1028
        %1038 = vset.pattern.permute.xlu0 0
        %1039 = vperm.xlu0 %1038, %v1015
        %v1040 = vpop.permute.xlu0 %1039
        %1041 = vset.pattern.permute.xlu0 0
        %1042 = vperm.xlu0 %1041, %v1017
        %v1043 = vpop.permute.xlu0 %1042
        %1044 = vset.pattern.permute.xlu0 0
        %1045 = vperm.xlu0 %1044, %v1019
        %v1046 = vpop.permute.xlu0 %1045
        %1047 = vset.pattern.permute.xlu0 0
        %1048 = vperm.xlu0 %1047, %v1021
        %v1049 = vpop.permute.xlu0 %1048
        %1050 = vset.pattern.permute.xlu0 0
        %1051 = vperm.xlu0 %1050, %v1023
        %v1052 = vpop.permute.xlu0 %1051
        %1053 = vset.pattern.permute.xlu0 0
        %1054 = vperm.xlu0 %1053, %v1025
        %v1055 = vpop.permute.xlu0 %1054
        %1056 = vset.pattern.permute.xlu0 0
        %1057 = vperm.xlu0 %1056, %v1027
        %v1058 = vpop.permute.xlu0 %1057
        %1059 = vset.pattern.permute.xlu0 0
        %1060 = vperm.xlu0 %1059, %v1029
        %v1061 = vpop.permute.xlu0 %1060
        %v1062 = vlaneseq
        %v1063 = vshrl.u32 %v1062, 7
        %v1064 = vsub.s32 %v913, %v1063
        %v1065 = vrot.slane %v1040, %v1064
        %v1066 = vlaneseq
        %v1067 = vshrl.u32 %v1066, 7
        %v1068 = vsub.s32 %v913, %v1067
        %v1069 = vrot.slane %v1043, %v1068
        %v1070 = vlaneseq
        %v1071 = vshrl.u32 %v1070, 7
        %v1072 = vsub.s32 %v913, %v1071
        %v1073 = vrot.slane %v1046, %v1072
        %v1074 = vlaneseq
        %v1075 = vshrl.u32 %v1074, 7
        %v1076 = vsub.s32 %v913, %v1075
        %v1077 = vrot.slane %v1049, %v1076
        %v1078 = vlaneseq
        %v1079 = vshrl.u32 %v1078, 7
        %v1080 = vsub.s32 %v913, %v1079
        %v1081 = vrot.slane %v1052, %v1080
        %v1082 = vlaneseq
        %v1083 = vshrl.u32 %v1082, 7
        %v1084 = vsub.s32 %v913, %v1083
        %v1085 = vrot.slane %v1055, %v1084
        %v1086 = vlaneseq
        %v1087 = vshrl.u32 %v1086, 7
        %v1088 = vsub.s32 %v913, %v1087
        %v1089 = vrot.slane %v1058, %v1088
        %v1090 = vlaneseq
        %v1091 = vshrl.u32 %v1090, 7
        %v1092 = vsub.s32 %v913, %v1091
        %v1093 = vrot.slane %v1061, %v1092
        %v1094 = vsel %vm946, %v1069, %v1065
        %v1095 = vsel %vm948, %v1073, %v1094
        %v1096 = vsel %vm950, %v1077, %v1095
        %v1097 = vsel %vm952, %v1081, %v1096
        %v1098 = vsel %vm954, %v1085, %v1097
        %v1099 = vsel %vm956, %v1089, %v1098
        %v1100 = vsel %vm958, %v1093, %v1099
        %v1102 = vsel %vm961, %v1100, 0.0
        %1103 = vadd.xlane.f32.xlu0 %v1102
        %v1104 = vpop.xlane.xlu0 %1103
        %v1105 = vrcp.pop %v1104
        %v1107 = vlaneseq
        %v1108 = vshrl.u32 %v1107, 7
        %v1109 = vsub.s32 0, %v1108
        %v1110 = vrot.slane %v1105, %v1109
        %v1111 = vlaneseq
        %v1112 = vshrl.u32 %v1111, 7
        %v1113 = vsub.s32 1, %v1112
        %v1114 = vrot.slane %v1105, %v1113
        %v1115 = vlaneseq
        %v1116 = vshrl.u32 %v1115, 7
        %v1117 = vsub.s32 2, %v1116
        %v1118 = vrot.slane %v1105, %v1117
        %v1119 = vlaneseq
        %v1120 = vshrl.u32 %v1119, 7
        %v1121 = vsub.s32 3, %v1120
        %v1122 = vrot.slane %v1105, %v1121
        %v1123 = vlaneseq
        %v1124 = vshrl.u32 %v1123, 7
        %v1125 = vsub.s32 4, %v1124
        %v1126 = vrot.slane %v1105, %v1125
        %v1127 = vlaneseq
        %v1128 = vshrl.u32 %v1127, 7
        %v1129 = vsub.s32 5, %v1128
        %v1130 = vrot.slane %v1105, %v1129
        %v1131 = vlaneseq
        %v1132 = vshrl.u32 %v1131, 7
        %v1133 = vsub.s32 6, %v1132
        %v1134 = vrot.slane %v1105, %v1133
        %v1135 = vlaneseq
        %v1136 = vshrl.u32 %v1135, 7
        %v1137 = vsub.s32 7, %v1136
        %v1138 = vrot.slane %v1105, %v1137
        %v1147 = vmul.f32 %v1015, %v1110
        %v1148 = vmul.f32 %v1017, %v1114
        %v1149 = vmul.f32 %v1019, %v1118
        %v1150 = vmul.f32 %v1021, %v1122
        %v1151 = vmul.f32 %v1023, %v1126
        %v1152 = vmul.f32 %v1025, %v1130
        %v1153 = vmul.f32 %v1027, %v1134
        %v1154 = vmul.f32 %v1029, %v1138
        %1156 = vset.pattern.permute.xlu0 0
        %1157 = vperm.xlu0 %1156, %v1147
        %v1158 = vpop.permute.xlu0 %1157
        %1161 = vset.pattern.permute.xlu0 0
        %1162 = vperm.xlu0 %1161, %v1148
        %v1163 = vpop.permute.xlu0 %1162
        %1166 = vset.pattern.permute.xlu0 0
        %1167 = vperm.xlu0 %1166, %v1149
        %v1168 = vpop.permute.xlu0 %1167
        %1171 = vset.pattern.permute.xlu0 0
        %1172 = vperm.xlu0 %1171, %v1150
        %v1173 = vpop.permute.xlu0 %1172
        %1176 = vset.pattern.permute.xlu0 0
        %1177 = vperm.xlu0 %1176, %v1151
        %v1178 = vpop.permute.xlu0 %1177
        %1181 = vset.pattern.permute.xlu0 0
        %1182 = vperm.xlu0 %1181, %v1152
        %v1183 = vpop.permute.xlu0 %1182
        %1186 = vset.pattern.permute.xlu0 0
        %1187 = vperm.xlu0 %1186, %v1153
        %v1188 = vpop.permute.xlu0 %1187
        %1191 = vset.pattern.permute.xlu0 0
        %1192 = vperm.xlu0 %1191, %v1154
        %v1193 = vpop.permute.xlu0 %1192
        %v1195 = vmul.f32 %v765, %v1158
        %v1196 = vmul.f32 %v766, %v1163
        %v1197 = vmul.f32 %v767, %v1168
        %v1198 = vmul.f32 %v768, %v1173
        %v1199 = vmul.f32 %v769, %v1178
        %v1200 = vmul.f32 %v770, %v1183
        %v1201 = vmul.f32 %v771, %v1188
        %v1202 = vmul.f32 %v772, %v1193
        %v1203 = vsel %vm879, %v1195, 0.0
        %v1204 = vrot.slane %v1203, 4
        %v1205 = vadd.f32 %v1203, %v1204
        %v1206 = vrot.slane %v1205, 2
        %v1207 = vadd.f32 %v1205, %v1206
        %v1208 = vrot.slane %v1207, 1
        %v1209 = vadd.f32 %v1207, %v1208
        %v1210 = vsel %vm879, %v1196, 0.0
        %v1211 = vrot.slane %v1210, 4
        %v1212 = vadd.f32 %v1210, %v1211
        %v1213 = vrot.slane %v1212, 2
        %v1214 = vadd.f32 %v1212, %v1213
        %v1215 = vrot.slane %v1214, 1
        %v1216 = vadd.f32 %v1214, %v1215
        %v1217 = vsel %vm879, %v1197, 0.0
        %v1218 = vrot.slane %v1217, 4
        %v1219 = vadd.f32 %v1217, %v1218
        %v1220 = vrot.slane %v1219, 2
        %v1221 = vadd.f32 %v1219, %v1220
        %v1222 = vrot.slane %v1221, 1
        %v1223 = vadd.f32 %v1221, %v1222
        %v1224 = vsel %vm879, %v1198, 0.0
        %v1225 = vrot.slane %v1224, 4
        %v1226 = vadd.f32 %v1224, %v1225
        %v1227 = vrot.slane %v1226, 2
        %v1228 = vadd.f32 %v1226, %v1227
        %v1229 = vrot.slane %v1228, 1
        %v1230 = vadd.f32 %v1228, %v1229
        %v1231 = vsel %vm879, %v1199, 0.0
        %v1232 = vrot.slane %v1231, 4
        %v1233 = vadd.f32 %v1231, %v1232
        %v1234 = vrot.slane %v1233, 2
        %v1235 = vadd.f32 %v1233, %v1234
        %v1236 = vrot.slane %v1235, 1
        %v1237 = vadd.f32 %v1235, %v1236
        %v1238 = vsel %vm879, %v1200, 0.0
        %v1239 = vrot.slane %v1238, 4
        %v1240 = vadd.f32 %v1238, %v1239
        %v1241 = vrot.slane %v1240, 2
        %v1242 = vadd.f32 %v1240, %v1241
        %v1243 = vrot.slane %v1242, 1
        %v1244 = vadd.f32 %v1242, %v1243
        %v1245 = vsel %vm879, %v1201, 0.0
        %v1246 = vrot.slane %v1245, 4
        %v1247 = vadd.f32 %v1245, %v1246
        %v1248 = vrot.slane %v1247, 2
        %v1249 = vadd.f32 %v1247, %v1248
        %v1250 = vrot.slane %v1249, 1
        %v1251 = vadd.f32 %v1249, %v1250
        %v1252 = vsel %vm879, %v1202, 0.0
        %v1253 = vrot.slane %v1252, 4
        %v1254 = vadd.f32 %v1252, %v1253
        %v1255 = vrot.slane %v1254, 2
        %v1256 = vadd.f32 %v1254, %v1255
        %v1257 = vrot.slane %v1256, 1
        %v1258 = vadd.f32 %v1256, %v1257
        %v1259 = vmul.f32 %v773, %v834
        %v1260 = vmul.f32 %v774, %v838
        %v1261 = vmul.f32 %v775, %v842
        %v1262 = vmul.f32 %v776, %v846
        %v1263 = vmul.f32 %v777, %v850
        %v1264 = vmul.f32 %v778, %v854
        %v1265 = vmul.f32 %v779, %v858
        %v1266 = vmul.f32 %v780, %v862
        %v1267 = vsel %vm879, %v1259, 0.0
        %1268 = vadd.xlane.f32.xlu0 %v1267
        %v1269 = vpop.xlane.xlu0 %1268
        %v1270 = vsel %vm879, %v1260, 0.0
        %1271 = vadd.xlane.f32.xlu0 %v1270
        %v1272 = vpop.xlane.xlu0 %1271
        %v1273 = vsel %vm879, %v1261, 0.0
        %1274 = vadd.xlane.f32.xlu0 %v1273
        %v1275 = vpop.xlane.xlu0 %1274
        %v1276 = vsel %vm879, %v1262, 0.0
        %1277 = vadd.xlane.f32.xlu0 %v1276
        %v1278 = vpop.xlane.xlu0 %1277
        %v1279 = vsel %vm879, %v1263, 0.0
        %1280 = vadd.xlane.f32.xlu0 %v1279
        %v1281 = vpop.xlane.xlu0 %1280
        %v1282 = vsel %vm879, %v1264, 0.0
        %1283 = vadd.xlane.f32.xlu0 %v1282
        %v1284 = vpop.xlane.xlu0 %1283
        %v1285 = vsel %vm879, %v1265, 0.0
        %1286 = vadd.xlane.f32.xlu0 %v1285
        %v1287 = vpop.xlane.xlu0 %1286
        %v1288 = vsel %vm879, %v1266, 0.0
        %1289 = vadd.xlane.f32.xlu0 %v1288
        %v1290 = vpop.xlane.xlu0 %1289
        %v1299 = vlaneseq
        %v1300 = vshrl.u32 %v1299, 7
        %v1301 = vsub.s32 %v913, %v1300
        %v1302 = vrot.slane %v1269, %v1301
        %v1303 = vlaneseq
        %v1304 = vshrl.u32 %v1303, 7
        %v1305 = vsub.s32 %v913, %v1304
        %v1306 = vrot.slane %v1272, %v1305
        %v1307 = vlaneseq
        %v1308 = vshrl.u32 %v1307, 7
        %v1309 = vsub.s32 %v913, %v1308
        %v1310 = vrot.slane %v1275, %v1309
        %v1311 = vlaneseq
        %v1312 = vshrl.u32 %v1311, 7
        %v1313 = vsub.s32 %v913, %v1312
        %v1314 = vrot.slane %v1278, %v1313
        %v1315 = vlaneseq
        %v1316 = vshrl.u32 %v1315, 7
        %v1317 = vsub.s32 %v913, %v1316
        %v1318 = vrot.slane %v1281, %v1317
        %v1319 = vlaneseq
        %v1320 = vshrl.u32 %v1319, 7
        %v1321 = vsub.s32 %v913, %v1320
        %v1322 = vrot.slane %v1284, %v1321
        %v1323 = vlaneseq
        %v1324 = vshrl.u32 %v1323, 7
        %v1325 = vsub.s32 %v913, %v1324
        %v1326 = vrot.slane %v1287, %v1325
        %v1327 = vlaneseq
        %v1328 = vshrl.u32 %v1327, 7
        %v1329 = vsub.s32 %v913, %v1328
        %v1330 = vrot.slane %v1290, %v1329
        %v1331 = vsel %vm946, %v1306, %v1302
        %v1332 = vsel %vm948, %v1310, %v1331
        %v1333 = vsel %vm950, %v1314, %v1332
        %v1334 = vsel %vm952, %v1318, %v1333
        %v1335 = vsel %vm954, %v1322, %v1334
        %v1336 = vsel %vm956, %v1326, %v1335
        %v1337 = vsel %vm958, %v1330, %v1336
        %v1339 = vsel %vm961, %v1337, -inf
        %1340 = vmax.xlane.f32.xlu0 %v1339
        %v1341 = vpop.xlane.xlu0 %1340
        %v1343 = vlaneseq
        %v1344 = vshrl.u32 %v1343, 7
        %v1345 = vsub.s32 0, %v1344
        %v1346 = vrot.slane %v1341, %v1345
        %v1347 = vlaneseq
        %v1348 = vshrl.u32 %v1347, 7
        %v1349 = vsub.s32 1, %v1348
        %v1350 = vrot.slane %v1341, %v1349
        %v1351 = vlaneseq
        %v1352 = vshrl.u32 %v1351, 7
        %v1353 = vsub.s32 2, %v1352
        %v1354 = vrot.slane %v1341, %v1353
        %v1355 = vlaneseq
        %v1356 = vshrl.u32 %v1355, 7
        %v1357 = vsub.s32 3, %v1356
        %v1358 = vrot.slane %v1341, %v1357
        %v1359 = vlaneseq
        %v1360 = vshrl.u32 %v1359, 7
        %v1361 = vsub.s32 4, %v1360
        %v1362 = vrot.slane %v1341, %v1361
        %v1363 = vlaneseq
        %v1364 = vshrl.u32 %v1363, 7
        %v1365 = vsub.s32 5, %v1364
        %v1366 = vrot.slane %v1341, %v1365
        %v1367 = vlaneseq
        %v1368 = vshrl.u32 %v1367, 7
        %v1369 = vsub.s32 6, %v1368
        %v1370 = vrot.slane %v1341, %v1369
        %v1371 = vlaneseq
        %v1372 = vshrl.u32 %v1371, 7
        %v1373 = vsub.s32 7, %v1372
        %v1374 = vrot.slane %v1341, %v1373
        %v1383 = vsub.f32 %v1269, %v1346
        %v1384 = vsub.f32 %v1272, %v1350
        %v1385 = vsub.f32 %v1275, %v1354
        %v1386 = vsub.f32 %v1278, %v1358
        %v1387 = vsub.f32 %v1281, %v1362
        %v1388 = vsub.f32 %v1284, %v1366
        %v1389 = vsub.f32 %v1287, %v1370
        %v1390 = vsub.f32 %v1290, %v1374
        %v1391 = vmul.f32 %v1383, 1.442695
        %v1392 = vpow.pop %v1391
        %v1393 = vmul.f32 %v1384, 1.442695
        %v1394 = vpow.pop %v1393
        %v1395 = vmul.f32 %v1385, 1.442695
        %v1396 = vpow.pop %v1395
        %v1397 = vmul.f32 %v1386, 1.442695
        %v1398 = vpow.pop %v1397
        %v1399 = vmul.f32 %v1387, 1.442695
        %v1400 = vpow.pop %v1399
        %v1401 = vmul.f32 %v1388, 1.442695
        %v1402 = vpow.pop %v1401
        %v1403 = vmul.f32 %v1389, 1.442695
        %v1404 = vpow.pop %v1403
        %v1405 = vmul.f32 %v1390, 1.442695
        %v1406 = vpow.pop %v1405
        %1415 = vset.pattern.permute.xlu0 0
        %1416 = vperm.xlu0 %1415, %v1392
        %v1417 = vpop.permute.xlu0 %1416
        %1418 = vset.pattern.permute.xlu0 0
        %1419 = vperm.xlu0 %1418, %v1394
        %v1420 = vpop.permute.xlu0 %1419
        %1421 = vset.pattern.permute.xlu0 0
        %1422 = vperm.xlu0 %1421, %v1396
        %v1423 = vpop.permute.xlu0 %1422
        %1424 = vset.pattern.permute.xlu0 0
        %1425 = vperm.xlu0 %1424, %v1398
        %v1426 = vpop.permute.xlu0 %1425
        %1427 = vset.pattern.permute.xlu0 0
        %1428 = vperm.xlu0 %1427, %v1400
        %v1429 = vpop.permute.xlu0 %1428
        %1430 = vset.pattern.permute.xlu0 0
        %1431 = vperm.xlu0 %1430, %v1402
        %v1432 = vpop.permute.xlu0 %1431
        %1433 = vset.pattern.permute.xlu0 0
        %1434 = vperm.xlu0 %1433, %v1404
        %v1435 = vpop.permute.xlu0 %1434
        %1436 = vset.pattern.permute.xlu0 0
        %1437 = vperm.xlu0 %1436, %v1406
        %v1438 = vpop.permute.xlu0 %1437
        %v1439 = vlaneseq
        %v1440 = vshrl.u32 %v1439, 7
        %v1441 = vsub.s32 %v913, %v1440
        %v1442 = vrot.slane %v1417, %v1441
        %v1443 = vlaneseq
        %v1444 = vshrl.u32 %v1443, 7
        %v1445 = vsub.s32 %v913, %v1444
        %v1446 = vrot.slane %v1420, %v1445
        %v1447 = vlaneseq
        %v1448 = vshrl.u32 %v1447, 7
        %v1449 = vsub.s32 %v913, %v1448
        %v1450 = vrot.slane %v1423, %v1449
        %v1451 = vlaneseq
        %v1452 = vshrl.u32 %v1451, 7
        %v1453 = vsub.s32 %v913, %v1452
        %v1454 = vrot.slane %v1426, %v1453
        %v1455 = vlaneseq
        %v1456 = vshrl.u32 %v1455, 7
        %v1457 = vsub.s32 %v913, %v1456
        %v1458 = vrot.slane %v1429, %v1457
        %v1459 = vlaneseq
        %v1460 = vshrl.u32 %v1459, 7
        %v1461 = vsub.s32 %v913, %v1460
        %v1462 = vrot.slane %v1432, %v1461
        %v1463 = vlaneseq
        %v1464 = vshrl.u32 %v1463, 7
        %v1465 = vsub.s32 %v913, %v1464
        %v1466 = vrot.slane %v1435, %v1465
        %v1467 = vlaneseq
        %v1468 = vshrl.u32 %v1467, 7
        %v1469 = vsub.s32 %v913, %v1468
        %v1470 = vrot.slane %v1438, %v1469
        %v1471 = vsel %vm946, %v1446, %v1442
        %v1472 = vsel %vm948, %v1450, %v1471
        %v1473 = vsel %vm950, %v1454, %v1472
        %v1474 = vsel %vm952, %v1458, %v1473
        %v1475 = vsel %vm954, %v1462, %v1474
        %v1476 = vsel %vm956, %v1466, %v1475
        %v1477 = vsel %vm958, %v1470, %v1476
        %v1479 = vsel %vm961, %v1477, 0.0
        %1480 = vadd.xlane.f32.xlu0 %v1479
        %v1481 = vpop.xlane.xlu0 %1480
        %v1482 = vrcp.pop %v1481
        %v1484 = vlaneseq
        %v1485 = vshrl.u32 %v1484, 7
        %v1486 = vsub.s32 0, %v1485
        %v1487 = vrot.slane %v1482, %v1486
        %v1488 = vlaneseq
        %v1489 = vshrl.u32 %v1488, 7
        %v1490 = vsub.s32 1, %v1489
        %v1491 = vrot.slane %v1482, %v1490
        %v1492 = vlaneseq
        %v1493 = vshrl.u32 %v1492, 7
        %v1494 = vsub.s32 2, %v1493
        %v1495 = vrot.slane %v1482, %v1494
        %v1496 = vlaneseq
        %v1497 = vshrl.u32 %v1496, 7
        %v1498 = vsub.s32 3, %v1497
        %v1499 = vrot.slane %v1482, %v1498
        %v1500 = vlaneseq
        %v1501 = vshrl.u32 %v1500, 7
        %v1502 = vsub.s32 4, %v1501
        %v1503 = vrot.slane %v1482, %v1502
        %v1504 = vlaneseq
        %v1505 = vshrl.u32 %v1504, 7
        %v1506 = vsub.s32 5, %v1505
        %v1507 = vrot.slane %v1482, %v1506
        %v1508 = vlaneseq
        %v1509 = vshrl.u32 %v1508, 7
        %v1510 = vsub.s32 6, %v1509
        %v1511 = vrot.slane %v1482, %v1510
        %v1512 = vlaneseq
        %v1513 = vshrl.u32 %v1512, 7
        %v1514 = vsub.s32 7, %v1513
        %v1515 = vrot.slane %v1482, %v1514
        %v1524 = vmul.f32 %v1392, %v1487
        %v1525 = vmul.f32 %v1394, %v1491
        %v1526 = vmul.f32 %v1396, %v1495
        %v1527 = vmul.f32 %v1398, %v1499
        %v1528 = vmul.f32 %v1400, %v1503
        %v1529 = vmul.f32 %v1402, %v1507
        %v1530 = vmul.f32 %v1404, %v1511
        %v1531 = vmul.f32 %v1406, %v1515
        %1533 = vset.pattern.permute.xlu0 0
        %1534 = vperm.xlu0 %1533, %v1524
        %v1535 = vpop.permute.xlu0 %1534
        %1538 = vset.pattern.permute.xlu0 0
        %1539 = vperm.xlu0 %1538, %v1525
        %v1540 = vpop.permute.xlu0 %1539
        %1543 = vset.pattern.permute.xlu0 0
        %1544 = vperm.xlu0 %1543, %v1526
        %v1545 = vpop.permute.xlu0 %1544
        %1548 = vset.pattern.permute.xlu0 0
        %1549 = vperm.xlu0 %1548, %v1527
        %v1550 = vpop.permute.xlu0 %1549
        %1553 = vset.pattern.permute.xlu0 0
        %1554 = vperm.xlu0 %1553, %v1528
        %v1555 = vpop.permute.xlu0 %1554
        %1558 = vset.pattern.permute.xlu0 0
        %1559 = vperm.xlu0 %1558, %v1529
        %v1560 = vpop.permute.xlu0 %1559
        %1563 = vset.pattern.permute.xlu0 0
        %1564 = vperm.xlu0 %1563, %v1530
        %v1565 = vpop.permute.xlu0 %1564
        %1568 = vset.pattern.permute.xlu0 0
        %1569 = vperm.xlu0 %1568, %v1531
        %v1570 = vpop.permute.xlu0 %1569
        %v1572 = vmul.f32 %v773, %v1535
        %v1573 = vmul.f32 %v774, %v1540
        %v1574 = vmul.f32 %v775, %v1545
        %v1575 = vmul.f32 %v776, %v1550
        %v1576 = vmul.f32 %v777, %v1555
        %v1577 = vmul.f32 %v778, %v1560
        %v1578 = vmul.f32 %v779, %v1565
        %v1579 = vmul.f32 %v780, %v1570
        %v1580 = vsel %vm879, %v1572, 0.0
        %v1581 = vrot.slane %v1580, 4
        %v1582 = vadd.f32 %v1580, %v1581
        %v1583 = vrot.slane %v1582, 2
        %v1584 = vadd.f32 %v1582, %v1583
        %v1585 = vrot.slane %v1584, 1
        %v1586 = vadd.f32 %v1584, %v1585
        %v1587 = vsel %vm879, %v1573, 0.0
        %v1588 = vrot.slane %v1587, 4
        %v1589 = vadd.f32 %v1587, %v1588
        %v1590 = vrot.slane %v1589, 2
        %v1591 = vadd.f32 %v1589, %v1590
        %v1592 = vrot.slane %v1591, 1
        %v1593 = vadd.f32 %v1591, %v1592
        %v1594 = vsel %vm879, %v1574, 0.0
        %v1595 = vrot.slane %v1594, 4
        %v1596 = vadd.f32 %v1594, %v1595
        %v1597 = vrot.slane %v1596, 2
        %v1598 = vadd.f32 %v1596, %v1597
        %v1599 = vrot.slane %v1598, 1
        %v1600 = vadd.f32 %v1598, %v1599
        %v1601 = vsel %vm879, %v1575, 0.0
        %v1602 = vrot.slane %v1601, 4
        %v1603 = vadd.f32 %v1601, %v1602
        %v1604 = vrot.slane %v1603, 2
        %v1605 = vadd.f32 %v1603, %v1604
        %v1606 = vrot.slane %v1605, 1
        %v1607 = vadd.f32 %v1605, %v1606
        %v1608 = vsel %vm879, %v1576, 0.0
        %v1609 = vrot.slane %v1608, 4
        %v1610 = vadd.f32 %v1608, %v1609
        %v1611 = vrot.slane %v1610, 2
        %v1612 = vadd.f32 %v1610, %v1611
        %v1613 = vrot.slane %v1612, 1
        %v1614 = vadd.f32 %v1612, %v1613
        %v1615 = vsel %vm879, %v1577, 0.0
        %v1616 = vrot.slane %v1615, 4
        %v1617 = vadd.f32 %v1615, %v1616
        %v1618 = vrot.slane %v1617, 2
        %v1619 = vadd.f32 %v1617, %v1618
        %v1620 = vrot.slane %v1619, 1
        %v1621 = vadd.f32 %v1619, %v1620
        %v1622 = vsel %vm879, %v1578, 0.0
        %v1623 = vrot.slane %v1622, 4
        %v1624 = vadd.f32 %v1622, %v1623
        %v1625 = vrot.slane %v1624, 2
        %v1626 = vadd.f32 %v1624, %v1625
        %v1627 = vrot.slane %v1626, 1
        %v1628 = vadd.f32 %v1626, %v1627
        %v1629 = vsel %vm879, %v1579, 0.0
        %v1630 = vrot.slane %v1629, 4
        %v1631 = vadd.f32 %v1629, %v1630
        %v1632 = vrot.slane %v1631, 2
        %v1633 = vadd.f32 %v1631, %v1632
        %v1634 = vrot.slane %v1633, 1
        %v1635 = vadd.f32 %v1633, %v1634
        %v1644 = vsel %vm946, %v1216, %v1209
        %v1645 = vsel %vm948, %v1223, %v1644
        %v1646 = vsel %vm950, %v1230, %v1645
        %v1647 = vsel %vm952, %v1237, %v1646
        %v1648 = vsel %vm954, %v1244, %v1647
        %v1649 = vsel %vm956, %v1251, %v1648
        %v1650 = vsel %vm958, %v1258, %v1649
        %v1659 = vsel %vm946, %v1593, %v1586
        %v1660 = vsel %vm948, %v1600, %v1659
        %v1661 = vsel %vm950, %v1607, %v1660
        %v1662 = vsel %vm952, %v1614, %v1661
        %v1663 = vsel %vm954, %v1621, %v1662
        %v1664 = vsel %vm956, %v1628, %v1663
        %v1665 = vsel %vm958, %v1635, %v1664
        %v1667 = vlaneseq
        %v1668 = vshrl.u32 %v1667, 7
        %v1669 = vsub.s32 0, %v1668
        %v1670 = vrot.slane %v548, %v1669
        %v1672 = vsel %vm879, %v1650, 0
        %v1674 = vsel %vm879, %v1665, 0
        %1676 = vmatprep.subr.mxu0 0.0
        %1677 = vmatpush1.msra.mxu0 %v544
        %1678 = vmatprep.subr.mxu0 0.0
        %1679 = vmatpush1.msra.mxu0 %v545
        %1680 = vmatprep.subr.mxu0 0.0
        %1681 = vmatpush1.msra.mxu0 %v546
        %1682 = vmatprep.subr.mxu0 0.0
        %1683 = vmatpush1.msra.mxu0 %v547
        %1684 = vmatprep.subr.mxu0 0.0
        %1685 = vmatpush1.msra.mxu0 0.0
        %1686 = vmatprep.subr.mxu0 0.0
        %1687 = vmatpush1.msra.mxu0 0.0
        %1688 = vmatprep.subr.mxu0 0.0
        %1689 = vmatpush1.msra.mxu0 0.0
        %1690 = vmatprep.subr.mxu0 0.0
        %1691 = vmatpush1.msra.mxu0 0.0
        %1692 = vmatprep.subr.mxu0 0.0
        %1693 = vmatpush1.msra.mxu0 0.0
        %1694 = vmatprep.subr.mxu0 0.0
        %1695 = vmatpush1.msra.mxu0 0.0
        %1696 = vmatprep.subr.mxu0 0.0
        %1697 = vmatpush1.msra.mxu0 0.0
        %1698 = vmatprep.subr.mxu0 0.0
        %1699 = vmatpush1.msra.mxu0 0.0
        %1700 = vmatprep.subr.mxu0 0.0
        %1701 = vmatpush1.msra.mxu0 0.0
        %1702 = vmatprep.subr.mxu0 0.0
        %1703 = vmatpush1.msra.mxu0 0.0
        %1704 = vmatprep.subr.mxu0 0.0
        %1705 = vmatpush1.msra.mxu0 0.0
        %1706 = vmatprep.subr.mxu0 0.0
        %1707 = vmatpush1.msra.mxu0 0.0
        %1708 = vmatprep.subr.mxu0 0.0
        %1709 = vmatpush1.msra.mxu0 0.0
        %1710 = vmatprep.subr.mxu0 0.0
        %1711 = vmatpush1.msra.mxu0 0.0
        %1712 = vmatprep.subr.mxu0 0.0
        %1713 = vmatpush1.msra.mxu0 0.0
        %1714 = vmatprep.subr.mxu0 0.0
        %1715 = vmatpush1.msra.mxu0 0.0
        %1716 = vmatprep.subr.mxu0 0.0
        %1717 = vmatpush1.msra.mxu0 0.0
        %1718 = vmatprep.subr.mxu0 0.0
        %1719 = vmatpush1.msra.mxu0 0.0
        %1720 = vmatprep.subr.mxu0 0.0
        %1721 = vmatpush1.msra.mxu0 0.0
        %1722 = vmatprep.subr.mxu0 0.0
        %1723 = vmatpush1.msra.mxu0 0.0
        %1724 = vmatprep.subr.mxu0 0.0
        %1725 = vmatpush1.msra.mxu0 0.0
        %1726 = vmatprep.subr.mxu0 0.0
        %1727 = vmatpush1.msra.mxu0 0.0
        %1728 = vmatprep.subr.mxu0 0.0
        %1729 = vmatpush1.msra.mxu0 0.0
        %1730 = vmatprep.subr.mxu0 0.0
        %1731 = vmatpush1.msra.mxu0 0.0
        %1732 = vmatprep.subr.mxu0 0.0
        %1733 = vmatpush1.msra.mxu0 0.0
        %1734 = vmatprep.subr.mxu0 0.0
        %1735 = vmatpush1.msra.mxu0 0.0
        %1736 = vmatprep.subr.mxu0 0.0
        %1737 = vmatpush1.msra.mxu0 0.0
        %1738 = vmatprep.subr.mxu0 0.0
        %1739 = vmatpush1.msra.mxu0 0.0
        %1740 = vmatprep.mubr.f32.mxu0 0.0
        %1741 = vmatmul.mubr.f32.gmra.mrb[0].mxu0 %v1672
        %v1742 = vpop.f32.mrb[0].mxu0
        %v1743 = vadd.f32 %v1670, %v1742
        %v1744 = vpop.f32.mrb[0].mxu0
        %1745 = vmatprep.mubr.f32.mxu0 0.0
        %1746 = vmatmul.mubr.f32.gmra.mrb[0].mxu0 %v1674
        %v1747 = vpop.f32.mrb[0].mxu0
        %v1748 = vadd.f32 %v1670, %v1747
        %v1749 = vpop.f32.mrb[0].mxu0
        %1750 = vdwg.mxu0
        %v1751 = vmax.f32 %v1743, 0.0
        %v1752 = vmax.f32 %v1748, 0.0
        %v1754 = vsel %vm879, %v1752, 0
        %1756 = vmatprep.subr.mxu0 0.0
        %1757 = vmatpush1.msra.mxu0 %v553
        %1758 = vmatprep.subr.mxu0 0.0
        %1759 = vmatpush1.msra.mxu0 %v554
        %1760 = vmatprep.subr.mxu0 0.0
        %1761 = vmatpush1.msra.mxu0 %v555
        %1762 = vmatprep.subr.mxu0 0.0
        %1763 = vmatpush1.msra.mxu0 %v556
        %1764 = vmatprep.subr.mxu0 0.0
        %1765 = vmatpush1.msra.mxu0 0.0
        %1766 = vmatprep.subr.mxu0 0.0
        %1767 = vmatpush1.msra.mxu0 0.0
        %1768 = vmatprep.subr.mxu0 0.0
        %1769 = vmatpush1.msra.mxu0 0.0
        %1770 = vmatprep.subr.mxu0 0.0
        %1771 = vmatpush1.msra.mxu0 0.0
        %1772 = vmatprep.subr.mxu0 0.0
        %1773 = vmatpush1.msra.mxu0 0.0
        %1774 = vmatprep.subr.mxu0 0.0
        %1775 = vmatpush1.msra.mxu0 0.0
        %1776 = vmatprep.subr.mxu0 0.0
        %1777 = vmatpush1.msra.mxu0 0.0
        %1778 = vmatprep.subr.mxu0 0.0
        %1779 = vmatpush1.msra.mxu0 0.0
        %1780 = vmatprep.subr.mxu0 0.0
        %1781 = vmatpush1.msra.mxu0 0.0
        %1782 = vmatprep.subr.mxu0 0.0
        %1783 = vmatpush1.msra.mxu0 0.0
        %1784 = vmatprep.subr.mxu0 0.0
        %1785 = vmatpush1.msra.mxu0 0.0
        %1786 = vmatprep.subr.mxu0 0.0
        %1787 = vmatpush1.msra.mxu0 0.0
        %1788 = vmatprep.subr.mxu0 0.0
        %1789 = vmatpush1.msra.mxu0 0.0
        %1790 = vmatprep.subr.mxu0 0.0
        %1791 = vmatpush1.msra.mxu0 0.0
        %1792 = vmatprep.subr.mxu0 0.0
        %1793 = vmatpush1.msra.mxu0 0.0
        %1794 = vmatprep.subr.mxu0 0.0
        %1795 = vmatpush1.msra.mxu0 0.0
        %1796 = vmatprep.subr.mxu0 0.0
        %1797 = vmatpush1.msra.mxu0 0.0
        %1798 = vmatprep.subr.mxu0 0.0
        %1799 = vmatpush1.msra.mxu0 0.0
        %1800 = vmatprep.subr.mxu0 0.0
        %1801 = vmatpush1.msra.mxu0 0.0
        %1802 = vmatprep.subr.mxu0 0.0
        %1803 = vmatpush1.msra.mxu0 0.0
        %1804 = vmatprep.subr.mxu0 0.0
        %1805 = vmatpush1.msra.mxu0 0.0
        %1806 = vmatprep.subr.mxu0 0.0
        %1807 = vmatpush1.msra.mxu0 0.0
        %1808 = vmatprep.subr.mxu0 0.0
        %1809 = vmatpush1.msra.mxu0 0.0
        %1810 = vmatprep.subr.mxu0 0.0
        %1811 = vmatpush1.msra.mxu0 0.0
        %1812 = vmatprep.subr.mxu0 0.0
        %1813 = vmatpush1.msra.mxu0 0.0
        %1814 = vmatprep.subr.mxu0 0.0
        %1815 = vmatpush1.msra.mxu0 0.0
        %1816 = vmatprep.subr.mxu0 0.0
        %1817 = vmatpush1.msra.mxu0 0.0
        %1818 = vmatprep.subr.mxu0 0.0
        %1819 = vmatpush1.msra.mxu0 0.0
        %1820 = vmatprep.mubr.f32.mxu0 0.0
        %1821 = vmatmul.mubr.f32.gmra.mrb[0].mxu0 %v1754
        %v1822 = vpop.f32.mrb[0].mxu0
        %v1823 = vadd.f32 0.0, %v1822
        %v1824 = vpop.f32.mrb[0].mxu0
        %1825 = vdwg.mxu0
        %v1827 = vsel %vm879, %v1751, 0
        %1829 = vmatprep.subr.mxu0 0.0
        %1830 = vmatpush1.msra.mxu0 %v549
        %1831 = vmatprep.subr.mxu0 0.0
        %1832 = vmatpush1.msra.mxu0 %v550
        %1833 = vmatprep.subr.mxu0 0.0
        %1834 = vmatpush1.msra.mxu0 %v551
        %1835 = vmatprep.subr.mxu0 0.0
        %1836 = vmatpush1.msra.mxu0 %v552
        %1837 = vmatprep.subr.mxu0 0.0
        %1838 = vmatpush1.msra.mxu0 0.0
        %1839 = vmatprep.subr.mxu0 0.0
        %1840 = vmatpush1.msra.mxu0 0.0
        %1841 = vmatprep.subr.mxu0 0.0
        %1842 = vmatpush1.msra.mxu0 0.0
        %1843 = vmatprep.subr.mxu0 0.0
        %1844 = vmatpush1.msra.mxu0 0.0
        %1845 = vmatprep.subr.mxu0 0.0
        %1846 = vmatpush1.msra.mxu0 0.0
        %1847 = vmatprep.subr.mxu0 0.0
        %1848 = vmatpush1.msra.mxu0 0.0
        %1849 = vmatprep.subr.mxu0 0.0
        %1850 = vmatpush1.msra.mxu0 0.0
        %1851 = vmatprep.subr.mxu0 0.0
        %1852 = vmatpush1.msra.mxu0 0.0
        %1853 = vmatprep.subr.mxu0 0.0
        %1854 = vmatpush1.msra.mxu0 0.0
        %1855 = vmatprep.subr.mxu0 0.0
        %1856 = vmatpush1.msra.mxu0 0.0
        %1857 = vmatprep.subr.mxu0 0.0
        %1858 = vmatpush1.msra.mxu0 0.0
        %1859 = vmatprep.subr.mxu0 0.0
        %1860 = vmatpush1.msra.mxu0 0.0
        %1861 = vmatprep.subr.mxu0 0.0
        %1862 = vmatpush1.msra.mxu0 0.0
        %1863 = vmatprep.subr.mxu0 0.0
        %1864 = vmatpush1.msra.mxu0 0.0
        %1865 = vmatprep.subr.mxu0 0.0
        %1866 = vmatpush1.msra.mxu0 0.0
        %1867 = vmatprep.subr.mxu0 0.0
        %1868 = vmatpush1.msra.mxu0 0.0
        %1869 = vmatprep.subr.mxu0 0.0
        %1870 = vmatpush1.msra.mxu0 0.0
        %1871 = vmatprep.subr.mxu0 0.0
        %1872 = vmatpush1.msra.mxu0 0.0
        %1873 = vmatprep.subr.mxu0 0.0
        %1874 = vmatpush1.msra.mxu0 0.0
        %1875 = vmatprep.subr.mxu0 0.0
        %1876 = vmatpush1.msra.mxu0 0.0
        %1877 = vmatprep.subr.mxu0 0.0
        %1878 = vmatpush1.msra.mxu0 0.0
        %1879 = vmatprep.subr.mxu0 0.0
        %1880 = vmatpush1.msra.mxu0 0.0
        %1881 = vmatprep.subr.mxu0 0.0
        %1882 = vmatpush1.msra.mxu0 0.0
        %1883 = vmatprep.subr.mxu0 0.0
        %1884 = vmatpush1.msra.mxu0 0.0
        %1885 = vmatprep.subr.mxu0 0.0
        %1886 = vmatpush1.msra.mxu0 0.0
        %1887 = vmatprep.subr.mxu0 0.0
        %1888 = vmatpush1.msra.mxu0 0.0
        %1889 = vmatprep.subr.mxu0 0.0
        %1890 = vmatpush1.msra.mxu0 0.0
        %1891 = vmatprep.subr.mxu0 0.0
        %1892 = vmatpush1.msra.mxu0 0.0
        %1893 = vmatprep.mubr.f32.mxu0 0.0
        %1894 = vmatmul.mubr.f32.gmra.mrb[0].mxu0 %v1827
        %v1895 = vpop.f32.mrb[0].mxu0
        %v1896 = vadd.f32 %v1823, %v1895
        %v1897 = vpop.f32.mrb[0].mxu0
        %1898 = vdwg.mxu0
        %vm1899 = vcmask 15360
        %v1900 = vsel %vm1899, %v1896, -inf
        %1901 = vmax.xlane.f32.xlu0 %v1900
        %v1902 = vpop.xlane.xlu0 %1901
        %v1903 = vsub.f32 %v1896, %v1902
        %v1904 = vmul.f32 %v1903, 1.442695
        %v1905 = vpow.pop %v1904
        %v1906 = vsel %vm1899, %v1905, 0.0
        %1907 = vadd.xlane.f32.xlu0 %v1906
        %v1908 = vpop.xlane.xlu0 %1907
        %v1909 = vrcp.pop %v1908
        %v1910 = vmul.f32 %v1905, %v1909
        %1911 = vst.msk [vmem:[%s532] sm:$0xff] %vm1899, %v1910
        %1913 = vset.pattern.permute.xlu0 0
        %1914 = vperm.xlu0 %1913, %v1910
        %v1915 = vpop.permute.xlu0 %1914
        %v1917 = vmul.f32 %v1915, %v1751
        %v1918 = vadd.f32 %v1917, 0.0
        %1919 = vset.pattern.permute.xlu0 1
        %1920 = vperm.xlu0 %1919, %v1910
        %v1921 = vpop.permute.xlu0 %1920
        %v1923 = vmul.f32 %v1921, %v1752
        %v1924 = vadd.f32 %v1918, %v1923
        %v1925 = vld [vmem:[%s7] sm:$0xff]
        %v1926 = vld [vmem:[%s7 + $0x8] sm:$0xff]
        %v1927 = vld [vmem:[%s7 + $0x10] sm:$0xff]
        %v1928 = vld [vmem:[%s7 + $0x18] sm:$0xff]
        %v1929 = vld [vmem:[%s8] sm:$0x1]
        %v1931 = vlaneseq
        %v1932 = vshrl.u32 %v1931, 7
        %v1933 = vsub.s32 0, %v1932
        %v1934 = vrot.slane %v1929, %v1933
        %v1937 = vsel %vm879, %v1924, 0
        %1939 = vmatprep.subr.mxu0 0.0
        %1940 = vmatpush1.msra.mxu0 %v1925
        %1941 = vmatprep.subr.mxu0 0.0
        %1942 = vmatpush1.msra.mxu0 %v1926
        %1943 = vmatprep.subr.mxu0 0.0
        %1944 = vmatpush1.msra.mxu0 %v1927
        %1945 = vmatprep.subr.mxu0 0.0
        %1946 = vmatpush1.msra.mxu0 %v1928
        %1947 = vmatprep.subr.mxu0 0.0
        %1948 = vmatpush1.msra.mxu0 0.0
        %1949 = vmatprep.subr.mxu0 0.0
        %1950 = vmatpush1.msra.mxu0 0.0
        %1951 = vmatprep.subr.mxu0 0.0
        %1952 = vmatpush1.msra.mxu0 0.0
        %1953 = vmatprep.subr.mxu0 0.0
        %1954 = vmatpush1.msra.mxu0 0.0
        %1955 = vmatprep.subr.mxu0 0.0
        %1956 = vmatpush1.msra.mxu0 0.0
        %1957 = vmatprep.subr.mxu0 0.0
        %1958 = vmatpush1.msra.mxu0 0.0
        %1959 = vmatprep.subr.mxu0 0.0
        %1960 = vmatpush1.msra.mxu0 0.0
        %1961 = vmatprep.subr.mxu0 0.0
        %1962 = vmatpush1.msra.mxu0 0.0
        %1963 = vmatprep.subr.mxu0 0.0
        %1964 = vmatpush1.msra.mxu0 0.0
        %1965 = vmatprep.subr.mxu0 0.0
        %1966 = vmatpush1.msra.mxu0 0.0
        %1967 = vmatprep.subr.mxu0 0.0
        %1968 = vmatpush1.msra.mxu0 0.0
        %1969 = vmatprep.subr.mxu0 0.0
        %1970 = vmatpush1.msra.mxu0 0.0
        %1971 = vmatprep.subr.mxu0 0.0
        %1972 = vmatpush1.msra.mxu0 0.0
        %1973 = vmatprep.subr.mxu0 0.0
        %1974 = vmatpush1.msra.mxu0 0.0
        %1975 = vmatprep.subr.mxu0 0.0
        %1976 = vmatpush1.msra.mxu0 0.0
        %1977 = vmatprep.subr.mxu0 0.0
        %1978 = vmatpush1.msra.mxu0 0.0
        %1979 = vmatprep.subr.mxu0 0.0
        %1980 = vmatpush1.msra.mxu0 0.0
        %1981 = vmatprep.subr.mxu0 0.0
        %1982 = vmatpush1.msra.mxu0 0.0
        %1983 = vmatprep.subr.mxu0 0.0
        %1984 = vmatpush1.msra.mxu0 0.0
        %1985 = vmatprep.subr.mxu0 0.0
        %1986 = vmatpush1.msra.mxu0 0.0
        %1987 = vmatprep.subr.mxu0 0.0
        %1988 = vmatpush1.msra.mxu0 0.0
        %1989 = vmatprep.subr.mxu0 0.0
        %1990 = vmatpush1.msra.mxu0 0.0
        %1991 = vmatprep.subr.mxu0 0.0
        %1992 = vmatpush1.msra.mxu0 0.0
        %1993 = vmatprep.subr.mxu0 0.0
        %1994 = vmatpush1.msra.mxu0 0.0
        %1995 = vmatprep.subr.mxu0 0.0
        %1996 = vmatpush1.msra.mxu0 0.0
        %1997 = vmatprep.subr.mxu0 0.0
        %1998 = vmatpush1.msra.mxu0 0.0
        %1999 = vmatprep.subr.mxu0 0.0
        %2000 = vmatpush1.msra.mxu0 0.0
        %2001 = vmatprep.subr.mxu0 0.0
        %2002 = vmatpush1.msra.mxu0 0.0
        %2003 = vmatprep.mubr.f32.mxu0 0.0
        %2004 = vmatmul.mubr.f32.gmra.mrb[0].mxu0 %v1937
        %v2005 = vpop.f32.mrb[0].mxu0
        %v2006 = vadd.f32 %v1934, %v2005
        %v2007 = vpop.f32.mrb[0].mxu0
        %2008 = vdwg.mxu0
        %v2009 = vmax.f32 %v2006, 0.0
        %v2010 = vld [vmem:[%s9] sm:$0xff]
        %v2011 = vld [vmem:[%s9 + $0x8] sm:$0xff]
        %v2012 = vld [vmem:[%s9 + $0x10] sm:$0xff]
        %v2013 = vld [vmem:[%s9 + $0x18] sm:$0xff]
        %v2014 = vld [vmem:[%s10] sm:$0xff]
        %v2015 = vld [vmem:[%s10 + $0x8] sm:$0xff]
        %v2016 = vld [vmem:[%s10 + $0x10] sm:$0xff]
        %v2017 = vld [vmem:[%s10 + $0x18] sm:$0xff]
        %v2019 = vsel %vm879, %v2009, 0
        %2021 = vmatprep.subr.mxu0 0.0
        %2022 = vmatpush1.msra.mxu0 %v2014
        %2023 = vmatprep.subr.mxu0 0.0
        %2024 = vmatpush1.msra.mxu0 %v2015
        %2025 = vmatprep.subr.mxu0 0.0
        %2026 = vmatpush1.msra.mxu0 %v2016
        %2027 = vmatprep.subr.mxu0 0.0
        %2028 = vmatpush1.msra.mxu0 %v2017
        %2029 = vmatprep.subr.mxu0 0.0
        %2030 = vmatpush1.msra.mxu0 0.0
        %2031 = vmatprep.subr.mxu0 0.0
        %2032 = vmatpush1.msra.mxu0 0.0
        %2033 = vmatprep.subr.mxu0 0.0
        %2034 = vmatpush1.msra.mxu0 0.0
        %2035 = vmatprep.subr.mxu0 0.0
        %2036 = vmatpush1.msra.mxu0 0.0
        %2037 = vmatprep.subr.mxu0 0.0
        %2038 = vmatpush1.msra.mxu0 0.0
        %2039 = vmatprep.subr.mxu0 0.0
        %2040 = vmatpush1.msra.mxu0 0.0
        %2041 = vmatprep.subr.mxu0 0.0
        %2042 = vmatpush1.msra.mxu0 0.0
        %2043 = vmatprep.subr.mxu0 0.0
        %2044 = vmatpush1.msra.mxu0 0.0
        %2045 = vmatprep.subr.mxu0 0.0
        %2046 = vmatpush1.msra.mxu0 0.0
        %2047 = vmatprep.subr.mxu0 0.0
        %2048 = vmatpush1.msra.mxu0 0.0
        %2049 = vmatprep.subr.mxu0 0.0
        %2050 = vmatpush1.msra.mxu0 0.0
        %2051 = vmatprep.subr.mxu0 0.0
        %2052 = vmatpush1.msra.mxu0 0.0
        %2053 = vmatprep.subr.mxu0 0.0
        %2054 = vmatpush1.msra.mxu0 0.0
        %2055 = vmatprep.subr.mxu0 0.0
        %2056 = vmatpush1.msra.mxu0 0.0
        %2057 = vmatprep.subr.mxu0 0.0
        %2058 = vmatpush1.msra.mxu0 0.0
        %2059 = vmatprep.subr.mxu0 0.0
        %2060 = vmatpush1.msra.mxu0 0.0
        %2061 = vmatprep.subr.mxu0 0.0
        %2062 = vmatpush1.msra.mxu0 0.0
        %2063 = vmatprep.subr.mxu0 0.0
        %2064 = vmatpush1.msra.mxu0 0.0
        %2065 = vmatprep.subr.mxu0 0.0
        %2066 = vmatpush1.msra.mxu0 0.0
        %2067 = vmatprep.subr.mxu0 0.0
        %2068 = vmatpush1.msra.mxu0 0.0
        %2069 = vmatprep.subr.mxu0 0.0
        %2070 = vmatpush1.msra.mxu0 0.0
        %2071 = vmatprep.subr.mxu0 0.0
        %2072 = vmatpush1.msra.mxu0 0.0
        %2073 = vmatprep.subr.mxu0 0.0
        %2074 = vmatpush1.msra.mxu0 0.0
        %2075 = vmatprep.subr.mxu0 0.0
        %2076 = vmatpush1.msra.mxu0 0.0
        %2077 = vmatprep.subr.mxu0 0.0
        %2078 = vmatpush1.msra.mxu0 0.0
        %2079 = vmatprep.subr.mxu0 0.0
        %2080 = vmatpush1.msra.mxu0 0.0
        %2081 = vmatprep.subr.mxu0 0.0
        %2082 = vmatpush1.msra.mxu0 0.0
        %2083 = vmatprep.subr.mxu0 0.0
        %2084 = vmatpush1.msra.mxu0 0.0
        %2085 = vmatprep.mubr.f32.mxu0 0.0
        %2086 = vmatmul.mubr.f32.gmra.mrb[0].mxu0 %v2019
        %v2087 = vpop.f32.mrb[0].mxu0
        %v2088 = vadd.f32 0.0, %v2087
        %v2089 = vpop.f32.mrb[0].mxu0
        %2090 = vdwg.mxu0
        %v2091 = vsel %vm879, %v534, 0
        %2093 = vmatprep.subr.mxu0 0.0
        %2094 = vmatpush1.msra.mxu0 %v2010
        %2095 = vmatprep.subr.mxu0 0.0
        %2096 = vmatpush1.msra.mxu0 %v2011
        %2097 = vmatprep.subr.mxu0 0.0
        %2098 = vmatpush1.msra.mxu0 %v2012
        %2099 = vmatprep.subr.mxu0 0.0
        %2100 = vmatpush1.msra.mxu0 %v2013
        %2101 = vmatprep.subr.mxu0 0.0
        %2102 = vmatpush1.msra.mxu0 0.0
        %2103 = vmatprep.subr.mxu0 0.0
        %2104 = vmatpush1.msra.mxu0 0.0
        %2105 = vmatprep.subr.mxu0 0.0
        %2106 = vmatpush1.msra.mxu0 0.0
        %2107 = vmatprep.subr.mxu0 0.0
        %2108 = vmatpush1.msra.mxu0 0.0
        %2109 = vmatprep.subr.mxu0 0.0
        %2110 = vmatpush1.msra.mxu0 0.0
        %2111 = vmatprep.subr.mxu0 0.0
        %2112 = vmatpush1.msra.mxu0 0.0
        %2113 = vmatprep.subr.mxu0 0.0
        %2114 = vmatpush1.msra.mxu0 0.0
        %2115 = vmatprep.subr.mxu0 0.0
        %2116 = vmatpush1.msra.mxu0 0.0
        %2117 = vmatprep.subr.mxu0 0.0
        %2118 = vmatpush1.msra.mxu0 0.0
        %2119 = vmatprep.subr.mxu0 0.0
        %2120 = vmatpush1.msra.mxu0 0.0
        %2121 = vmatprep.subr.mxu0 0.0
        %2122 = vmatpush1.msra.mxu0 0.0
        %2123 = vmatprep.subr.mxu0 0.0
        %2124 = vmatpush1.msra.mxu0 0.0
        %2125 = vmatprep.subr.mxu0 0.0
        %2126 = vmatpush1.msra.mxu0 0.0
        %2127 = vmatprep.subr.mxu0 0.0
        %2128 = vmatpush1.msra.mxu0 0.0
        %2129 = vmatprep.subr.mxu0 0.0
        %2130 = vmatpush1.msra.mxu0 0.0
        %2131 = vmatprep.subr.mxu0 0.0
        %2132 = vmatpush1.msra.mxu0 0.0
        %2133 = vmatprep.subr.mxu0 0.0
        %2134 = vmatpush1.msra.mxu0 0.0
        %2135 = vmatprep.subr.mxu0 0.0
        %2136 = vmatpush1.msra.mxu0 0.0
        %2137 = vmatprep.subr.mxu0 0.0
        %2138 = vmatpush1.msra.mxu0 0.0
        %2139 = vmatprep.subr.mxu0 0.0
        %2140 = vmatpush1.msra.mxu0 0.0
        %2141 = vmatprep.subr.mxu0 0.0
        %2142 = vmatpush1.msra.mxu0 0.0
        %2143 = vmatprep.subr.mxu0 0.0
        %2144 = vmatpush1.msra.mxu0 0.0
        %2145 = vmatprep.subr.mxu0 0.0
        %2146 = vmatpush1.msra.mxu0 0.0
        %2147 = vmatprep.subr.mxu0 0.0
        %2148 = vmatpush1.msra.mxu0 0.0
        %2149 = vmatprep.subr.mxu0 0.0
        %2150 = vmatpush1.msra.mxu0 0.0
        %2151 = vmatprep.subr.mxu0 0.0
        %2152 = vmatpush1.msra.mxu0 0.0
        %2153 = vmatprep.subr.mxu0 0.0
        %2154 = vmatpush1.msra.mxu0 0.0
        %2155 = vmatprep.subr.mxu0 0.0
        %2156 = vmatpush1.msra.mxu0 0.0
        %2157 = vmatprep.mubr.f32.mxu0 0.0
        %2158 = vmatmul.mubr.f32.gmra.mrb[0].mxu0 %v2091
        %v2159 = vpop.f32.mrb[0].mxu0
        %v2160 = vadd.f32 %v2088, %v2159
        %v2161 = vpop.f32.mrb[0].mxu0
        %2162 = vdwg.mxu0
        %v2163 = vld [vmem:[%s11] sm:$0x1]
        %v2165 = vlaneseq
        %v2166 = vshrl.u32 %v2165, 7
        %v2167 = vsub.s32 0, %v2166
        %v2168 = vrot.slane %v2163, %v2167
        %v2170 = vadd.f32 %v2160, %v2168
        %v2171 = vmax.f32 %v2170, 0.0
        %2172 = vst.msk [vmem:[%s521] sm:$0xff] %vm879, %v2171
        %s2173 = sand.u32 %s304, 1
        %s2174 = scalar_lea.sflag [#allocation4], %s2173
        %s2175 = sand.u32 %s304, 1
        %s2176 = smul.addr %s2175, 8
        %s2177 = scalar_lea.vmem [#allocation7], %s2176
        %p2178 = scmp.lt.s32.totalorder %s34, 1
        %s2179 = scalar_select %p2178, %s34, 1
        %s2180 = smul.addr %s2179, 8
        %s2181 = scalar_lea.vmem %s13, %s2180
        // Predicated region
        $region77: #{tpu_custom_call.1} parent=67 // pred_check
          %p2182 = pneg %p314
        $region78: #{tpu_custom_call.1} parent=67 // pred_check_branch
          %2184 = sbr.rel (%p2182) target = $region80
        $region79: #{tpu_custom_call.1} parent=67 // pred_region
          %s2186 = ssub.s32 128, 128
          %2187 = vsyncadd %s2174, %s2186
          %s2188 = smul.addr %s34, 128
          %s2189 = scalar_lea.hbm %s12, %s2188
          %s2191 = sshll.u32 %s2177, 4
          %s2192 = int_to_ptr.vmem [resolvable:$true] %s2191
          %2194 = dma.vmem_to_hbm [thread:$0]  %s2192, 128, %s2189, %s2174
        $region80: #{tpu_custom_call.1} parent=67 // pred_fallthru
          _
        // Predicated region
        $region81: #{tpu_custom_call.1} parent=67 // pred_check
          %p2195 = pneg %p340
        $region82: #{tpu_custom_call.1} parent=67 // pred_check_branch
          %2197 = sbr.rel (%p2195) target = $region84
        $region83: #{tpu_custom_call.1} parent=67 // pred_region
          _
        $region84: #{tpu_custom_call.1} parent=67 // pred_fallthru
          _
      $region68: #{tpu_custom_call.1} parent=5 // pred_fallthru
        _
      %p2198 = scmp.le.s32.totalorder 2, %s29
      // Predicated region
      $region85: #{tpu_custom_call.1} parent=5 // pred_check
        %p2199 = pneg %p2198
      $region86: #{tpu_custom_call.1} parent=5 // pred_check_branch
        %2201 = sbr.rel (%p2199) target = $region88
      $region87: #{tpu_custom_call.1} parent=5 // pred_region
        %s2202 = ssub.s32 %s29, 2
        // Predicated region
        $region89: #{tpu_custom_call.1} parent=87 // pred_check
          %p2203 = pneg %p320
        $region90: #{tpu_custom_call.1} parent=87 // pred_check_branch
          %2205 = sbr.rel (%p2203) target = $region92
        $region91: #{tpu_custom_call.1} parent=87 // pred_region
          %s2206 = sand.u32 %s305, 1
          %s2207 = scalar_lea.sflag [#allocation4], %s2206
          %s2208 = sand.u32 %s305, 1
          %s2209 = smul.addr %s2208, 8
          %s2210 = scalar_lea.vmem [#allocation7], %s2209
          %2211 = dma.done %s2207, 128
        $region92: #{tpu_custom_call.1} parent=87 // pred_fallthru
          _
        // Predicated region
        $region93: #{tpu_custom_call.1} parent=87 // pred_check
          %p2212 = pneg %p346
        $region94: #{tpu_custom_call.1} parent=87 // pred_check_branch
          %2214 = sbr.rel (%p2212) target = $region96
        $region95: #{tpu_custom_call.1} parent=87 // pred_region
          %p2215 = scmp.lt.s32.totalorder %s35, 1
          %s2216 = scalar_select %p2215, %s35, 1
          %s2217 = smul.addr %s2216, 8
          %s2218 = scalar_lea.vmem %s13, %s2217
        $region96: #{tpu_custom_call.1} parent=87 // pred_fallthru
          _
      $region88: #{tpu_custom_call.1} parent=5 // pred_fallthru
        _
    $region6: #{tpu_custom_call.1} parent=1 // loop_footer
      %s33 = sadd.s32 1, %s29
    $region7: #{tpu_custom_call.1} parent=1 // loop_footer_branch
      %28 = sbr.rel target = $region3
    $region8: #{tpu_custom_call.1} parent=1 // loop_exit
      _
    %2219 = vsyncpa [#allocation3], 1
    %s2220 = scalar_lea.sflag [#allocation3], 1
    %2221 = vsyncpa %s2220, 1
    %2222 = vsyncpa [#allocation6], 1
    %s2223 = scalar_lea.sflag [#allocation6], 1
    %2224 = vsyncpa %s2223, 1
    %2225 = vsyncpa [#allocation4], 1
    %s2226 = scalar_lea.sflag [#allocation4], 1
    %2227 = vsyncpa %s2226, 1

</llo_original>
